<compile_context>
chip_gen: v7x
topology: tpu7x:2x2x1
jax: 0.10.0
libtpu: 0.0.40
codegen_flags: <defaults>
</compile_context>

<pallas_src>
import functools

import jax
import jax.numpy as jnp
from jax import lax
from jax.experimental import pallas as pl
from jax.experimental.pallas import tpu as pltpu


def _fp_kernel(x1aug_ref, sq1_ref, x2aug_ref, sq2_ref, p1_ref, p2_ref,
               w0a_ref, w0b_ref, b0_ref, w1_ref, b1_ref, out_ref, *, nbits):
    """One (batch, N-tile) grid step.

    x1aug_ref: [1, TN, Ka]  split-bf16 query coords   [hi | lo | hi | 0-pad]
    sq1_ref  : [1, TN, 1]   ||xyz1||^2 (f32, precomputed in the wrapper)
    x2aug_ref: [1, Ka, Sp]  split-bf16 source coords  [hi ; hi ; lo ; 0-pad]
    sq2_ref  : [1, 1, Sp]   ||xyz2||^2 (f32, sentinel-huge on padded columns)
    p1_ref   : [1, TN, D1]  features at query points (f32)
    p2_ref   : [1, Sp, D2]  features at source points (bf16, zero on padding)
    weights  : folded Conv1d(k=1)+BN(eval); first layer split points1/interp
    out_ref  : [1, TN, Cp]  lane-dense padded output
    """
    x1aug = x1aug_ref[0]
    x2aug = x2aug_ref[0]
    sq1 = sq1_ref[0]
    sq2 = sq2_ref[0]
    p2 = p2_ref[0]

    TN = x1aug.shape[0]
    Sp = x2aug.shape[1]
    D2 = p2.shape[1]

    # ---- square_distance: near-f32 via ONE split-bf16 MXU matmul --------------
    # x.y ~= hi_x.hi_y + lo_x.hi_y + hi_x.lo_y, realised as a single K=Ka matmul
    # on pre-concatenated operands (no in-kernel transpose / source norms).
    prod = jnp.dot(x1aug, x2aug, preferred_element_type=jnp.float32)   # [TN,Sp]
    # Clamp: cancellation can give tiny negatives for (near-)coincident points;
    # 1e-12 also keeps the packed keys away from denormals (FTZ) while leaving
    # 1/(d + 1e-8) effectively unchanged.
    d = jnp.maximum(sq1 - 2.0 * prod + sq2, 1e-12)

    # ---- top-3 nearest neighbours: ONE cross-lane reduction per pass ----------
    # Pack the column index into the low `nbits` mantissa bits of the distance;
    # a single jnp.min recovers both argmin column and (to within the cleared
    # low bits) the distance.  Padded columns hold a far-away sentinel so they
    # never win; (iota & mask) collisions with padded columns are harmless
    # because their p2 rows are zero.
    idx_mask = (1 << nbits) - 1
    inv_mask = jnp.int32(~idx_mask)
    iota_low = lax.broadcasted_iota(jnp.int32, (TN, Sp), 1) & idx_mask
    keys = pltpu.bitcast(
        (pltpu.bitcast(d, jnp.int32) & inv_mask) | iota_low, jnp.float32)

    BIG = jnp.float32(1e30)
    interp = jnp.zeros((TN, D2), jnp.float32)
    total = jnp.zeros((TN, 1), jnp.float32)
    for _ in range(3):
        m_key = jnp.min(keys, axis=-1, keepdims=True)              # [TN, 1]
        m_bits = pltpu.bitcast(m_key, jnp.int32)
        col = m_bits & idx_mask                                    # argmin column
        m_val = pltpu.bitcast(m_bits & inv_mask, jnp.float32)      # ~exact dist
        hit = iota_low == col                                      # [TN, Sp]
        recip = 1.0 / (m_val + 1e-8)                               # [TN, 1]
        # bf16 one-hot gather on the MXU (one-hot rows exact in bf16).
        g = jnp.dot(hit.astype(jnp.bfloat16), p2,
                    preferred_element_type=jnp.float32)            # [TN, D2]
        interp = interp + recip * g
        total = total + recip
        keys = jnp.where(hit, BIG, keys)
    # Normalise AFTER the gathers: exact [TN,1] reciprocal (cheap) + [TN,D2] mul.
    interp = interp * (1.0 / total)

    # ---- MLP: relu(BN(Conv1d(cat([points1, interp])))) x2 ---------------------
    # bf16 operands on the MXU, f32 accumulation; biases (incl. folded BN shift)
    # added in f32 after accumulation.
    cd = w0a_ref.dtype                                             # bf16
    h = jnp.dot(p1_ref[0].astype(cd), w0a_ref[...],
                preferred_element_type=jnp.float32)
    h = h + jnp.dot(interp.astype(cd), w0b_ref[...],
                    preferred_element_type=jnp.float32)
    h = jnp.maximum(h + b0_ref[...], 0.0)
    h = jnp.dot(h.astype(cd), w1_ref[...], preferred_element_type=jnp.float32)
    h = jnp.maximum(h + b1_ref[...], 0.0)
    out_ref[0] = h.astype(out_ref.dtype)


def _round_up(x, m):
    return (x + m - 1) // m * m


def _pick_tile_n(n, max_tile):
    """Largest multiple of 8 that divides n and is <= max_tile (0 if none)."""
    cap = min(max_tile, n)
    cap -= cap % 8
    for t in range(cap, 7, -8):
        if n % t == 0:
            return t
    return 0


def _default_tiling():
    """(tile_n, vmem_limit_bytes) per TPU generation (review guidance)."""
    try:
        kind = jax.devices()[0].device_kind.lower()
    except Exception:
        kind = ""
    if "v5" in kind or "v6" in kind:       # 128 MiB physical VMEM
        return 512, 100 * 1024 * 1024
    if "v7" in kind:                       # 64 MiB physical VMEM
        return 512, 52 * 1024 * 1024
    return 256, None                       # unknown: compiler defaults


def feature_propagation(xyz1, xyz2, points1, points2, params, *,
                        tile_n=None, vmem_limit_bytes=None):
    """xyz1:[B,N,3], xyz2:[B,S,3], points1:[B,N,D1], points2:[B,S,D2] -> [B,N,Cout].

    VMEM guidance: v5e/v6e (128 MiB) tile_n 512-1024 with ~100 MiB limit;
    v7x (64 MiB) tile_n 512 with ~52 MiB limit (fits because the dense f32
    [TN,S] selection buffer was removed).  Dominant live VMEM is ~4-5 [TN,S_pad]
    f32 temporaries plus the double-buffered p1/p2/out blocks.
    """
    # TODO(synk): the S == 1 repeat branch and the points1-is-None branch of the
    # torch module are not wired up (requires S > 1 and points1 given).
    B, N, C = xyz1.shape
    _, S, _ = xyz2.shape
    D1 = points1.shape[-1]
    D2 = points2.shape[-1]
    w0a, w0b, b0, w1, b1 = params
    C_hid = w0a.shape[-1]
    C_out = w1.shape[-1]
    assert S > 1 and points1 is not None

    dflt_tile, dflt_vmem = _default_tiling()
    tile_n = dflt_tile if tile_n is None else tile_n
    vmem_limit_bytes = dflt_vmem if vmem_limit_bytes is None else vmem_limit_bytes
    tile_n = max(8, tile_n - tile_n % 8)

    # ---- N tiling: prefer a tile dividing N (no HBM-padding copies of the big
    # [B,N,*] tensors); fall back to padding only if no such tile exists. -------
    TN = _pick_tile_n(N, tile_n)
    if TN:
        N_pad = N
    else:
        TN = min(tile_n, _round_up(N, 8))
        N_pad = _round_up(N, TN)
    S_pad = _round_up(S, 128)              # lane-dense [*, S] vector ops
    C_out_pad = _round_up(C_out, 128)      # lane-dense (unmasked) output stores

    if N_pad != N:
        xyz1 = jnp.pad(xyz1, ((0, 0), (0, N_pad - N), (0, 0)))
        points1 = jnp.pad(points1, ((0, 0), (0, N_pad - N), (0, 0)))
    if S_pad != S:
        # Far-away sentinel coords: padded columns never win the top-3.
        # Zero features: harmless where (iota & mask) index collisions occur.
        xyz2 = jnp.pad(xyz2, ((0, 0), (0, S_pad - S), (0, 0)),
                       constant_values=1e6)
        points2 = jnp.pad(points2, ((0, 0), (0, S_pad - S), (0, 0)))

    f32 = jnp.float32
    xyz1 = xyz1.astype(f32)
    xyz2 = xyz2.astype(f32)

    # Split-bf16 operands for a near-f32 distance matmul on the MXU:
    #   x.y ~= hi_x.hi_y + lo_x.hi_y + hi_x.lo_y,   lo = x - bf16(x),
    # packed into ONE K=K_aug matmul on pre-concatenated, pre-transposed
    # operands; ||.||^2 terms are precomputed per batch (review item: no
    # per-tile transpose / source-norm reduction inside the kernel).
    def _split(a):
        hi = a.astype(jnp.bfloat16)
        lo = (a - hi.astype(f32)).astype(jnp.bfloat16)
        return hi, lo

    hi1, lo1 = _split(xyz1)
    hi2, lo2 = _split(xyz2)
    K_aug = _round_up(3 * C, 8)
    zpad1 = jnp.zeros(hi1.shape[:-1] + (K_aug - 3 * C,), jnp.bfloat16)
    zpad2 = jnp.zeros(hi2.shape[:-1] + (K_aug - 3 * C,), jnp.bfloat16)
    x1aug = jnp.concatenate([hi1, lo1, hi1, zpad1], axis=-1)        # [B,N_pad,Ka]
    x2aug = jnp.swapaxes(
        jnp.concatenate([hi2, hi2, lo2, zpad2], axis=-1), 1, 2)     # [B,Ka,S_pad]
    sq1 = jnp.sum(xyz1 * xyz1, axis=-1, keepdims=True)              # [B,N_pad,1]
    sq2 = jnp.sum(xyz2 * xyz2, axis=-1)[:, None, :]                 # [B,1,S_pad]

    # bf16 source features / weights for single-pass MXU matmuls (biases and
    # folded BN shift stay f32, added after f32 accumulation).
    p2_b = points2.astype(jnp.bfloat16)
    w0a_b = w0a.astype(jnp.bfloat16)
    w0b_b = w0b.astype(jnp.bfloat16)
    w1_b = jnp.pad(w1, ((0, 0), (0, C_out_pad - C_out))).astype(jnp.bfloat16)
    b1_p = jnp.pad(b1, ((0, 0), (0, C_out_pad - C_out)))

    nbits = max(1, (S - 1).bit_length())   # index bits packed into the keys
    assert nbits <= 20

    tile_map = lambda b, n: (b, n, 0)      # per-(batch, N-tile) blocks
    batch_map = lambda b, n: (b, 0, 0)     # per-batch, N-invariant blocks
    w_map = lambda b, n: (0, 0)            # grid-invariant weights
    # TODO(synk): single-buffer the batch-/grid-invariant specs (pipeline_mode /
    # one-shot scratch DMA) to reclaim their pointless double-buffer VMEM.

    # v7x megacore: with B >= 2 shard across cores on the batch axis only so
    # both cores reuse (not re-fetch) the same xyz2/p2 blocks.
    dim_sem = ("parallel", "parallel" if B == 1 else "arbitrary")
    cp = dict(dimension_semantics=dim_sem)
    if vmem_limit_bytes is not None:
        cp["vmem_limit_bytes"] = vmem_limit_bytes

    out = pl.pallas_call(
        functools.partial(_fp_kernel, nbits=nbits),
        # TODO(synk): emit bf16 output if the consumer accepts it (halves the
        # HBM writeback and the double-buffered output block).
        out_shape=jax.ShapeDtypeStruct((B, N_pad, C_out_pad), jnp.float32),
        grid_spec=pltpu.PrefetchScalarGridSpec(
            num_scalar_prefetch=0,
            grid=(B, N_pad // TN),
            in_specs=[
                pl.BlockSpec((1, TN, K_aug), tile_map),       # x1aug
                pl.BlockSpec((1, TN, 1), tile_map),           # ||xyz1||^2
                pl.BlockSpec((1, K_aug, S_pad), batch_map),   # x2aug (transposed)
                pl.BlockSpec((1, 1, S_pad), batch_map),       # ||xyz2||^2
                pl.BlockSpec((1, TN, D1), tile_map),          # points1
                pl.BlockSpec((1, S_pad, D2), batch_map),      # points2 (bf16)
                pl.BlockSpec((D1, C_hid), w_map),
                pl.BlockSpec((D2, C_hid), w_map),
                pl.BlockSpec((1, C_hid), w_map),
                pl.BlockSpec((C_hid, C_out_pad), w_map),
                pl.BlockSpec((1, C_out_pad), w_map),
            ],
            out_specs=pl.BlockSpec((1, TN, C_out_pad), tile_map),
        ),
        compiler_params=pltpu.CompilerParams(**cp),
    )(x1aug, sq1, x2aug, sq2, points1, p2_b, w0a_b, w0b_b, b0, w1_b, b1_p)

    return out[:, :N, :C_out]


def init_params(key, d1, d2, mlp, bn_eps=1e-5):
    """Deterministic Conv1d(k=1) + BatchNorm1d params, BN (eval mode) folded in."""
    in_channel = d1 + d2
    keys = jax.random.split(key, 4 * len(mlp))
    last = in_channel
    folded = []
    for i, out_c in enumerate(mlp):
        kw, kb, kg, kbe = keys[4 * i:4 * i + 4]
        W = 0.1 * jax.random.normal(kw, (out_c, last), jnp.float32)
        b = 0.1 * jax.random.normal(kb, (out_c,), jnp.float32)
        gamma = 1.0 + 0.1 * jax.random.normal(kg, (out_c,), jnp.float32)
        beta = 0.1 * jax.random.normal(kbe, (out_c,), jnp.float32)
        run_mean = jnp.zeros((out_c,), jnp.float32)
        run_var = jnp.ones((out_c,), jnp.float32)
        scale = gamma / jnp.sqrt(run_var + bn_eps)
        W_eff = (W * scale[:, None]).T                                # [Cin, Cout]
        b_eff = (scale * (b - run_mean) + beta)[None, :]              # [1, Cout]
        folded.append((W_eff, b_eff))
        last = out_c
    (W0, b0), (W1, b1) = folded
    w0a = W0[:d1]      # applied to points1
    w0b = W0[d1:]      # applied to interpolated points
    return w0a, w0b, b0, W1, b1


def ref_forward(xyz1, xyz2, points1, points2, params,
                compute_dtype=jnp.float32, packed_select_nbits=None):
    """Pure-JAX reference mirroring the PyTorch forward (eval-mode BN folded).

    packed_select_nbits=None  -> module-faithful selection: full-precision
                                 distances + argsort top-3.
    packed_select_nbits=nbits -> kernel-faithful selection: split-bf16 distances
                                 + packed-key top-3 (used at larger point counts
                                 to avoid flaky near-tie rank flips vs argsort).
    compute_dtype controls the feature-gather / MLP matmul precision (the
    kernel uses bfloat16 there).
    """
    w0a, w0b, b0, w1, b1 = params
    B, N, _ = xyz1.shape
    S = xyz2.shape[1]
    f32 = jnp.float32
    if packed_select_nbits is None:
        prod = jnp.einsum('bnc,bmc->bnm', xyz1, xyz2,
                          precision=jax.lax.Precision.HIGHEST)
    else:
        hi1 = xyz1.astype(jnp.bfloat16)
        lo1 = (xyz1 - hi1.astype(f32)).astype(jnp.bfloat16)
        hi2 = xyz2.astype(jnp.bfloat16)
        lo2 = (xyz2 - hi2.astype(f32)).astype(jnp.bfloat16)
        prod = (jnp.einsum('bnc,bmc->bnm', hi1, hi2, preferred_element_type=f32)
                + jnp.einsum('bnc,bmc->bnm', lo1, hi2, preferred_element_type=f32)
                + jnp.einsum('bnc,bmc->bnm', hi1, lo2, preferred_element_type=f32))
    d = (jnp.sum(xyz1 ** 2, -1)[:, :, None] - 2.0 * prod
         + jnp.sum(xyz2 ** 2, -1)[:, None, :])
    d = jnp.maximum(d, 1e-12)   # >= 0 in exact arithmetic; clamp matches kernel

    if packed_select_nbits is None:
        idx = jnp.argsort(d, axis=-1)[:, :, :3]
        dists = jnp.take_along_axis(d, idx, axis=-1)
    else:
        nbits = packed_select_nbits
        mask = (1 << nbits) - 1
        inv = jnp.int32(~mask)
        iota = (jnp.arange(S, dtype=jnp.int32) & mask)[None, None, :]
        keys = jax.lax.bitcast_convert_type(
            (jax.lax.bitcast_convert_type(d, jnp.int32) & inv) | iota, f32)
        cols, vals = [], []
        for _ in range(3):
            mk = jnp.min(keys, axis=-1, keepdims=True)
            mb = jax.lax.bitcast_convert_type(mk, jnp.int32)
            col = mb & mask
            cols.append(col)
            vals.append(jax.lax.bitcast_convert_type(mb & inv, f32))
            keys = jnp.where(iota == col, jnp.float32(1e30), keys)
        idx = jnp.concatenate(cols, axis=-1)
        dists = jnp.concatenate(vals, axis=-1)

    recip = 1.0 / (dists + 1e-8)
    norm = jnp.sum(recip, axis=2, keepdims=True)
    weight = recip / norm
    cd = compute_dtype
    gathered = points2[jnp.arange(B)[:, None, None], idx, :].astype(cd).astype(f32)
    interp = jnp.sum(gathered * weight[..., None], axis=2)            # [B,N,D2]
    h = (jnp.dot(points1.astype(cd), w0a.astype(cd), preferred_element_type=f32)
         + jnp.dot(interp.astype(cd), w0b.astype(cd), preferred_element_type=f32)
         + b0)
    h = jnp.maximum(h, 0.0)
    h = jnp.dot(h.astype(cd), w1.astype(cd), preferred_element_type=f32) + b1
    return jnp.maximum(h, 0.0)


if __name__ == "__main__":
    # --- small test: fidelity vs the module (argsort) reference -----------------
    B, N, S, C = 2, 16, 8, 3
    D1, D2 = 16, 16
    mlp = [32, 32]

    key = jax.random.PRNGKey(0)
    k1, k2, k3, k4, kp = jax.random.split(key, 5)
    xyz1 = jax.random.normal(k1, (B, N, C), jnp.float32)
    xyz2 = jax.random.normal(k2, (B, S, C), jnp.float32)
    points1 = jax.random.normal(k3, (B, N, D1), jnp.float32)
    points2 = jax.random.normal(k4, (B, S, D2), jnp.float32)
    params = init_params(kp, D1, D2, mlp)

    out = jax.block_until_ready(
        feature_propagation(xyz1, xyz2, points1, points2, params))
    assert out.shape == (B, N, mlp[-1]), out.shape

    ref_bf16 = ref_forward(xyz1, xyz2, points1, points2, params,
                           compute_dtype=jnp.bfloat16)
    assert jnp.allclose(out, ref_bf16, rtol=1e-2, atol=1e-2), \
        float(jnp.max(jnp.abs(out - ref_bf16)))

    ref_f32 = ref_forward(xyz1, xyz2, points1, points2, params,
                          compute_dtype=jnp.float32)
    assert jnp.allclose(out, ref_f32, rtol=3e-2, atol=3e-2), \
        float(jnp.max(jnp.abs(out - ref_f32)))

    # --- medium test: S > 128 (multi-lane-tile), multiple N tiles, padded C_out --
    B2, N2, S2 = 2, 384, 160
    D1b, D2b = 32, 64
    mlp2 = [64, 96]
    kk = jax.random.split(jax.random.PRNGKey(1), 5)
    xyz1b = jax.random.normal(kk[0], (B2, N2, 3), jnp.float32)
    xyz2b = jax.random.normal(kk[1], (B2, S2, 3), jnp.float32)
    p1b = jax.random.normal(kk[2], (B2, N2, D1b), jnp.float32)
    p2b = jax.random.normal(kk[3], (B2, S2, D2b), jnp.float32)
    params2 = init_params(kk[4], D1b, D2b, mlp2)

    out2 = jax.block_until_ready(
        feature_propagation(xyz1b, xyz2b, p1b, p2b, params2, tile_n=128))
    assert out2.shape == (B2, N2, mlp2[-1]), out2.shape

    # Selection-matched (packed-key) reference: exercises the Pallas plumbing at
    # larger shapes without flaky near-tie rank differences vs argsort; module
    # fidelity (argsort top-3) is asserted by the small test above.
    ref2 = ref_forward(xyz1b, xyz2b, p1b, p2b, params2,
                       compute_dtype=jnp.bfloat16,
                       packed_select_nbits=(S2 - 1).bit_length())
    assert jnp.allclose(out2, ref2, rtol=1e-2, atol=1e-2), \
        float(jnp.max(jnp.abs(out2 - ref2)))

    print("KERNEL_OK")
</pallas_src>

<mosaic_0001>
module attributes {stable_mosaic.version = 11 : i64} {
  func.func @_fp_kernel(%arg0: i32, %arg1: i32, %arg2: memref<1x16x16xbf16, #tpu.memory_space<vmem>>, %arg3: memref<1x16x1xf32, #tpu.memory_space<vmem>>, %arg4: memref<1x16x128xbf16, #tpu.memory_space<vmem>>, %arg5: memref<1x1x128xf32, #tpu.memory_space<vmem>>, %arg6: memref<1x16x16xf32, #tpu.memory_space<vmem>>, %arg7: memref<1x128x16xbf16, #tpu.memory_space<vmem>>, %arg8: memref<16x32xbf16, #tpu.memory_space<vmem>>, %arg9: memref<16x32xbf16, #tpu.memory_space<vmem>>, %arg10: memref<1x32xf32, #tpu.memory_space<vmem>>, %arg11: memref<32x128xbf16, #tpu.memory_space<vmem>>, %arg12: memref<1x128xf32, #tpu.memory_space<vmem>>, %arg13: memref<1x16x128xf32, #tpu.memory_space<vmem>>) attributes {dimension_semantics = [#tpu.dimension_semantics<parallel>, #tpu.dimension_semantics<arbitrary>], iteration_bounds = array<i64: 2, 1>, scalar_prefetch = 0 : i64, scratch_operands = 0 : i64, tpu.core_type = #tpu.core_type<tc>, window_params = [{transform_indices = @transform_0, window_bounds = array<i64: 1, 16, 16>}, {transform_indices = @transform_1, window_bounds = array<i64: 1, 16, 1>}, {transform_indices = @transform_2, window_bounds = array<i64: 1, 16, 128>}, {transform_indices = @transform_3, window_bounds = array<i64: 1, 1, 128>}, {transform_indices = @transform_4, window_bounds = array<i64: 1, 16, 16>}, {transform_indices = @transform_5, window_bounds = array<i64: 1, 128, 16>}, {pipeline_mode = #tpu.pipeline_mode<synchronous>, transform_indices = @transform_6, window_bounds = array<i64: 16, 32>}, {pipeline_mode = #tpu.pipeline_mode<synchronous>, transform_indices = @transform_7, window_bounds = array<i64: 16, 32>}, {pipeline_mode = #tpu.pipeline_mode<synchronous>, transform_indices = @transform_8, window_bounds = array<i64: 1, 32>}, {pipeline_mode = #tpu.pipeline_mode<synchronous>, transform_indices = @transform_9, window_bounds = array<i64: 32, 128>}, {pipeline_mode = #tpu.pipeline_mode<synchronous>, transform_indices = @transform_10, window_bounds = array<i64: 1, 128>}, {transform_indices = @transform_11, window_bounds = array<i64: 1, 16, 128>}]} {
    %c0 = arith.constant 0 : index
    %c0_0 = arith.constant 0 : index
    %c0_1 = arith.constant 0 : index
    %0 = vector.load %arg2[%c0, %c0_0, %c0_1] : memref<1x16x16xbf16, #tpu.memory_space<vmem>>, vector<1x16x16xbf16>
    %1 = vector.shape_cast %0 : vector<1x16x16xbf16> to vector<16x16xbf16>
    %c0_2 = arith.constant 0 : index
    %c0_3 = arith.constant 0 : index
    %c0_4 = arith.constant 0 : index
    %2 = vector.load %arg4[%c0_2, %c0_3, %c0_4] : memref<1x16x128xbf16, #tpu.memory_space<vmem>>, vector<1x16x128xbf16>
    %3 = vector.shape_cast %2 : vector<1x16x128xbf16> to vector<16x128xbf16>
    %c0_5 = arith.constant 0 : index
    %c0_6 = arith.constant 0 : index
    %c0_7 = arith.constant 0 : index
    %4 = vector.load %arg3[%c0_5, %c0_6, %c0_7] : memref<1x16x1xf32, #tpu.memory_space<vmem>>, vector<1x16x1xf32>
    %5 = vector.shape_cast %4 : vector<1x16x1xf32> to vector<16x1xf32>
    %c0_8 = arith.constant 0 : index
    %c0_9 = arith.constant 0 : index
    %c0_10 = arith.constant 0 : index
    %6 = vector.load %arg5[%c0_8, %c0_9, %c0_10] : memref<1x1x128xf32, #tpu.memory_space<vmem>>, vector<1x1x128xf32>
    %7 = vector.shape_cast %6 : vector<1x1x128xf32> to vector<1x128xf32>
    %c0_11 = arith.constant 0 : index
    %c0_12 = arith.constant 0 : index
    %c0_13 = arith.constant 0 : index
    %8 = vector.load %arg7[%c0_11, %c0_12, %c0_13] : memref<1x128x16xbf16, #tpu.memory_space<vmem>>, vector<1x128x16xbf16>
    %9 = vector.shape_cast %8 : vector<1x128x16xbf16> to vector<128x16xbf16>
    %cst = arith.constant dense<0.000000e+00> : vector<16x128xf32>
    %10 = tpu.matmul %1, %3, %cst {dimension_numbers = #tpu.dot_dimension_numbers<[1], [0], [0], [1], [0, 0, 1, 1], [], []>} : vector<16x16xbf16>, vector<16x128xbf16>, vector<16x128xf32> -> vector<16x128xf32>
    %cst_14 = arith.constant 2.000000e+00 : f32
    %11 = vector.broadcast %cst_14 : f32 to vector<16x128xf32>
    %12 = arith.mulf %11, %10 : vector<16x128xf32>
    %13 = vector.broadcast %5 : vector<16x1xf32> to vector<16x128xf32>
    %14 = arith.subf %13, %12 : vector<16x128xf32>
    %15 = vector.broadcast %7 : vector<1x128xf32> to vector<16x128xf32>
    %16 = arith.addf %14, %15 : vector<16x128xf32>
    %cst_15 = arith.constant 9.99999996E-13 : f32
    %17 = vector.broadcast %cst_15 : f32 to vector<16x128xf32>
    %18 = arith.maximumf %16, %17 : vector<16x128xf32>
    %19 = tpu.iota {dimensions = array<i32: 1>} : vector<16x128xi32>
    %c7_i32 = arith.constant 7 : i32
    %20 = vector.broadcast %c7_i32 : i32 to vector<16x128xi32>
    %21 = arith.andi %19, %20 : vector<16x128xi32>
    %22 = tpu.bitcast %18 : vector<16x128xf32> -> vector<16x128xi32>
    %c-8_i32 = arith.constant -8 : i32
    %23 = vector.broadcast %c-8_i32 : i32 to vector<16x128xi32>
    %24 = arith.andi %22, %23 : vector<16x128xi32>
    %25 = arith.ori %24, %21 : vector<16x128xi32>
    %26 = tpu.bitcast %25 : vector<16x128xi32> -> vector<16x128xf32>
    %cst_16 = arith.constant 0.000000e+00 : f32
    %27 = vector.broadcast %cst_16 : f32 to vector<16x16xf32>
    %cst_17 = arith.constant 0.000000e+00 : f32
    %28 = vector.broadcast %cst_17 : f32 to vector<16x1xf32>
    %cst_18 = arith.constant dense<0x7F800000> : vector<16xf32>
    %29 = vector.multi_reduction <minimumf>, %26, %cst_18 [1] : vector<16x128xf32> to vector<16xf32>
    %30 = vector.shape_cast %29 : vector<16xf32> to vector<16x1xf32>
    %31 = tpu.bitcast %30 : vector<16x1xf32> -> vector<16x1xi32>
    %c7_i32_19 = arith.constant 7 : i32
    %32 = vector.broadcast %c7_i32_19 : i32 to vector<16x1xi32>
    %33 = arith.andi %31, %32 : vector<16x1xi32>
    %c-8_i32_20 = arith.constant -8 : i32
    %34 = vector.broadcast %c-8_i32_20 : i32 to vector<16x1xi32>
    %35 = arith.andi %31, %34 : vector<16x1xi32>
    %36 = tpu.bitcast %35 : vector<16x1xi32> -> vector<16x1xf32>
    %37 = vector.broadcast %33 : vector<16x1xi32> to vector<16x128xi32>
    %38 = arith.cmpi eq, %21, %37 : vector<16x128xi32>
    %cst_21 = arith.constant 9.99999993E-9 : f32
    %39 = vector.broadcast %cst_21 : f32 to vector<16x1xf32>
    %40 = arith.addf %36, %39 : vector<16x1xf32>
    %cst_22 = arith.constant 1.000000e+00 : f32
    %41 = vector.broadcast %cst_22 : f32 to vector<16x1xf32>
    %42 = arith.divf %41, %40 : vector<16x1xf32>
    %43 = arith.extui %38 : vector<16x128xi1> to vector<16x128xi32>
    %44 = arith.sitofp %43 : vector<16x128xi32> to vector<16x128xf32>
    %45 = arith.truncf %44 : vector<16x128xf32> to vector<16x128xbf16>
    %cst_23 = arith.constant dense<0.000000e+00> : vector<16x16xf32>
    %46 = tpu.matmul %45, %9, %cst_23 {dimension_numbers = #tpu.dot_dimension_numbers<[1], [0], [0], [1], [0, 0, 1, 1], [], []>} : vector<16x128xbf16>, vector<128x16xbf16>, vector<16x16xf32> -> vector<16x16xf32>
    %47 = vector.broadcast %42 : vector<16x1xf32> to vector<16x16xf32>
    %48 = arith.mulf %47, %46 : vector<16x16xf32>
    %49 = arith.addf %27, %48 : vector<16x16xf32>
    %50 = arith.addf %28, %42 : vector<16x1xf32>
    %cst_24 = arith.constant 1.000000e+30 : f32
    %51 = vector.broadcast %cst_24 : f32 to vector<16x128xf32>
    %52 = arith.select %38, %51, %26 : vector<16x128xi1>, vector<16x128xf32>
    %cst_25 = arith.constant dense<0x7F800000> : vector<16xf32>
    %53 = vector.multi_reduction <minimumf>, %52, %cst_25 [1] : vector<16x128xf32> to vector<16xf32>
    %54 = vector.shape_cast %53 : vector<16xf32> to vector<16x1xf32>
    %55 = tpu.bitcast %54 : vector<16x1xf32> -> vector<16x1xi32>
    %c7_i32_26 = arith.constant 7 : i32
    %56 = vector.broadcast %c7_i32_26 : i32 to vector<16x1xi32>
    %57 = arith.andi %55, %56 : vector<16x1xi32>
    %c-8_i32_27 = arith.constant -8 : i32
    %58 = vector.broadcast %c-8_i32_27 : i32 to vector<16x1xi32>
    %59 = arith.andi %55, %58 : vector<16x1xi32>
    %60 = tpu.bitcast %59 : vector<16x1xi32> -> vector<16x1xf32>
    %61 = vector.broadcast %57 : vector<16x1xi32> to vector<16x128xi32>
    %62 = arith.cmpi eq, %21, %61 : vector<16x128xi32>
    %cst_28 = arith.constant 9.99999993E-9 : f32
    %63 = vector.broadcast %cst_28 : f32 to vector<16x1xf32>
    %64 = arith.addf %60, %63 : vector<16x1xf32>
    %cst_29 = arith.constant 1.000000e+00 : f32
    %65 = vector.broadcast %cst_29 : f32 to vector<16x1xf32>
    %66 = arith.divf %65, %64 : vector<16x1xf32>
    %67 = arith.extui %62 : vector<16x128xi1> to vector<16x128xi32>
    %68 = arith.sitofp %67 : vector<16x128xi32> to vector<16x128xf32>
    %69 = arith.truncf %68 : vector<16x128xf32> to vector<16x128xbf16>
    %cst_30 = arith.constant dense<0.000000e+00> : vector<16x16xf32>
    %70 = tpu.matmul %69, %9, %cst_30 {dimension_numbers = #tpu.dot_dimension_numbers<[1], [0], [0], [1], [0, 0, 1, 1], [], []>} : vector<16x128xbf16>, vector<128x16xbf16>, vector<16x16xf32> -> vector<16x16xf32>
    %71 = vector.broadcast %66 : vector<16x1xf32> to vector<16x16xf32>
    %72 = arith.mulf %71, %70 : vector<16x16xf32>
    %73 = arith.addf %49, %72 : vector<16x16xf32>
    %74 = arith.addf %50, %66 : vector<16x1xf32>
    %cst_31 = arith.constant 1.000000e+30 : f32
    %75 = vector.broadcast %cst_31 : f32 to vector<16x128xf32>
    %76 = arith.select %62, %75, %52 : vector<16x128xi1>, vector<16x128xf32>
    %cst_32 = arith.constant dense<0x7F800000> : vector<16xf32>
    %77 = vector.multi_reduction <minimumf>, %76, %cst_32 [1] : vector<16x128xf32> to vector<16xf32>
    %78 = vector.shape_cast %77 : vector<16xf32> to vector<16x1xf32>
    %79 = tpu.bitcast %78 : vector<16x1xf32> -> vector<16x1xi32>
    %c7_i32_33 = arith.constant 7 : i32
    %80 = vector.broadcast %c7_i32_33 : i32 to vector<16x1xi32>
    %81 = arith.andi %79, %80 : vector<16x1xi32>
    %c-8_i32_34 = arith.constant -8 : i32
    %82 = vector.broadcast %c-8_i32_34 : i32 to vector<16x1xi32>
    %83 = arith.andi %79, %82 : vector<16x1xi32>
    %84 = tpu.bitcast %83 : vector<16x1xi32> -> vector<16x1xf32>
    %85 = vector.broadcast %81 : vector<16x1xi32> to vector<16x128xi32>
    %86 = arith.cmpi eq, %21, %85 : vector<16x128xi32>
    %cst_35 = arith.constant 9.99999993E-9 : f32
    %87 = vector.broadcast %cst_35 : f32 to vector<16x1xf32>
    %88 = arith.addf %84, %87 : vector<16x1xf32>
    %cst_36 = arith.constant 1.000000e+00 : f32
    %89 = vector.broadcast %cst_36 : f32 to vector<16x1xf32>
    %90 = arith.divf %89, %88 : vector<16x1xf32>
    %91 = arith.extui %86 : vector<16x128xi1> to vector<16x128xi32>
    %92 = arith.sitofp %91 : vector<16x128xi32> to vector<16x128xf32>
    %93 = arith.truncf %92 : vector<16x128xf32> to vector<16x128xbf16>
    %cst_37 = arith.constant dense<0.000000e+00> : vector<16x16xf32>
    %94 = tpu.matmul %93, %9, %cst_37 {dimension_numbers = #tpu.dot_dimension_numbers<[1], [0], [0], [1], [0, 0, 1, 1], [], []>} : vector<16x128xbf16>, vector<128x16xbf16>, vector<16x16xf32> -> vector<16x16xf32>
    %95 = vector.broadcast %90 : vector<16x1xf32> to vector<16x16xf32>
    %96 = arith.mulf %95, %94 : vector<16x16xf32>
    %97 = arith.addf %73, %96 : vector<16x16xf32>
    %98 = arith.addf %74, %90 : vector<16x1xf32>
    %cst_38 = arith.constant 1.000000e+00 : f32
    %99 = vector.broadcast %cst_38 : f32 to vector<16x1xf32>
    %100 = arith.divf %99, %98 : vector<16x1xf32>
    %101 = vector.broadcast %100 : vector<16x1xf32> to vector<16x16xf32>
    %102 = arith.mulf %97, %101 : vector<16x16xf32>
    %c0_39 = arith.constant 0 : index
    %c0_40 = arith.constant 0 : index
    %c0_41 = arith.constant 0 : index
    %103 = vector.load %arg6[%c0_39, %c0_40, %c0_41] : memref<1x16x16xf32, #tpu.memory_space<vmem>>, vector<1x16x16xf32>
    %104 = vector.shape_cast %103 : vector<1x16x16xf32> to vector<16x16xf32>
    %105 = arith.truncf %104 : vector<16x16xf32> to vector<16x16xbf16>
    %c0_42 = arith.constant 0 : index
    %c0_43 = arith.constant 0 : index
    %106 = vector.load %arg8[%c0_42, %c0_43] : memref<16x32xbf16, #tpu.memory_space<vmem>>, vector<16x32xbf16>
    %cst_44 = arith.constant dense<0.000000e+00> : vector<16x32xf32>
    %107 = tpu.matmul %105, %106, %cst_44 {dimension_numbers = #tpu.dot_dimension_numbers<[1], [0], [0], [1], [0, 0, 1, 1], [], []>} : vector<16x16xbf16>, vector<16x32xbf16>, vector<16x32xf32> -> vector<16x32xf32>
    %108 = arith.truncf %102 : vector<16x16xf32> to vector<16x16xbf16>
    %c0_45 = arith.constant 0 : index
    %c0_46 = arith.constant 0 : index
    %109 = vector.load %arg9[%c0_45, %c0_46] : memref<16x32xbf16, #tpu.memory_space<vmem>>, vector<16x32xbf16>
    %cst_47 = arith.constant dense<0.000000e+00> : vector<16x32xf32>
    %110 = tpu.matmul %108, %109, %cst_47 {dimension_numbers = #tpu.dot_dimension_numbers<[1], [0], [0], [1], [0, 0, 1, 1], [], []>} : vector<16x16xbf16>, vector<16x32xbf16>, vector<16x32xf32> -> vector<16x32xf32>
    %111 = arith.addf %107, %110 : vector<16x32xf32>
    %c0_48 = arith.constant 0 : index
    %c0_49 = arith.constant 0 : index
    %112 = vector.load %arg10[%c0_48, %c0_49] : memref<1x32xf32, #tpu.memory_space<vmem>>, vector<1x32xf32>
    %113 = vector.broadcast %112 : vector<1x32xf32> to vector<16x32xf32>
    %114 = arith.addf %111, %113 : vector<16x32xf32>
    %cst_50 = arith.constant 0.000000e+00 : f32
    %115 = vector.broadcast %cst_50 : f32 to vector<16x32xf32>
    %116 = arith.maximumf %114, %115 : vector<16x32xf32>
    %117 = arith.truncf %116 : vector<16x32xf32> to vector<16x32xbf16>
    %c0_51 = arith.constant 0 : index
    %c0_52 = arith.constant 0 : index
    %118 = vector.load %arg11[%c0_51, %c0_52] : memref<32x128xbf16, #tpu.memory_space<vmem>>, vector<32x128xbf16>
    %cst_53 = arith.constant dense<0.000000e+00> : vector<16x128xf32>
    %119 = tpu.matmul %117, %118, %cst_53 {dimension_numbers = #tpu.dot_dimension_numbers<[1], [0], [0], [1], [0, 0, 1, 1], [], []>} : vector<16x32xbf16>, vector<32x128xbf16>, vector<16x128xf32> -> vector<16x128xf32>
    %c0_54 = arith.constant 0 : index
    %c0_55 = arith.constant 0 : index
    %120 = vector.load %arg12[%c0_54, %c0_55] : memref<1x128xf32, #tpu.memory_space<vmem>>, vector<1x128xf32>
    %121 = vector.broadcast %120 : vector<1x128xf32> to vector<16x128xf32>
    %122 = arith.addf %119, %121 : vector<16x128xf32>
    %cst_56 = arith.constant 0.000000e+00 : f32
    %123 = vector.broadcast %cst_56 : f32 to vector<16x128xf32>
    %124 = arith.maximumf %122, %123 : vector<16x128xf32>
    %c0_57 = arith.constant 0 : index
    %c0_58 = arith.constant 0 : index
    %c0_59 = arith.constant 0 : index
    %125 = vector.load %arg13[%c0_57, %c0_58, %c0_59] : memref<1x16x128xf32, #tpu.memory_space<vmem>>, vector<1x16x128xf32>
    %126 = vector.shape_cast %125 : vector<1x16x128xf32> to vector<16x128xf32>
    %127 = vector.shape_cast %124 : vector<16x128xf32> to vector<1x16x128xf32>
    tpu.vector_store %arg13[%c0_57, %c0_58, %c0_59], %127 {strides = array<i32>} : memref<1x16x128xf32, #tpu.memory_space<vmem>>, vector<1x16x128xf32>,
    return
  }
  func.func @transform_0(%arg0: i32, %arg1: i32) -> (i32, i32, i32) {
    %c0_i32 = arith.constant 0 : i32
    %c0_i32_0 = arith.constant 0 : i32
    return %arg0, %arg1, %c0_i32 : i32, i32, i32
  }
  func.func @transform_1(%arg0: i32, %arg1: i32) -> (i32, i32, i32) {
    %c0_i32 = arith.constant 0 : i32
    %c0_i32_0 = arith.constant 0 : i32
    return %arg0, %arg1, %c0_i32 : i32, i32, i32
  }
  func.func @transform_2(%arg0: i32, %arg1: i32) -> (i32, i32, i32) {
    %c0_i32 = arith.constant 0 : i32
    %c0_i32_0 = arith.constant 0 : i32
    %c0_i32_1 = arith.constant 0 : i32
    return %arg0, %c0_i32, %c0_i32_0 : i32, i32, i32
  }
  func.func @transform_3(%arg0: i32, %arg1: i32) -> (i32, i32, i32) {
    %c0_i32 = arith.constant 0 : i32
    %c0_i32_0 = arith.constant 0 : i32
    %c0_i32_1 = arith.constant 0 : i32
    return %arg0, %c0_i32, %c0_i32_0 : i32, i32, i32
  }
  func.func @transform_4(%arg0: i32, %arg1: i32) -> (i32, i32, i32) {
    %c0_i32 = arith.constant 0 : i32
    %c0_i32_0 = arith.constant 0 : i32
    return %arg0, %arg1, %c0_i32 : i32, i32, i32
  }
  func.func @transform_5(%arg0: i32, %arg1: i32) -> (i32, i32, i32) {
    %c0_i32 = arith.constant 0 : i32
    %c0_i32_0 = arith.constant 0 : i32
    %c0_i32_1 = arith.constant 0 : i32
    return %arg0, %c0_i32, %c0_i32_0 : i32, i32, i32
  }
  func.func @transform_6(%arg0: i32, %arg1: i32) -> (i32, i32) {
    %c0_i32 = arith.constant 0 : i32
    %c0_i32_0 = arith.constant 0 : i32
    %c0_i32_1 = arith.constant 0 : i32
    return %c0_i32, %c0_i32_0 : i32, i32
  }
  func.func @transform_7(%arg0: i32, %arg1: i32) -> (i32, i32) {
    %c0_i32 = arith.constant 0 : i32
    %c0_i32_0 = arith.constant 0 : i32
    %c0_i32_1 = arith.constant 0 : i32
    return %c0_i32, %c0_i32_0 : i32, i32
  }
  func.func @transform_8(%arg0: i32, %arg1: i32) -> (i32, i32) {
    %c0_i32 = arith.constant 0 : i32
    %c0_i32_0 = arith.constant 0 : i32
    %c0_i32_1 = arith.constant 0 : i32
    return %c0_i32, %c0_i32_0 : i32, i32
  }
  func.func @transform_9(%arg0: i32, %arg1: i32) -> (i32, i32) {
    %c0_i32 = arith.constant 0 : i32
    %c0_i32_0 = arith.constant 0 : i32
    %c0_i32_1 = arith.constant 0 : i32
    return %c0_i32, %c0_i32_0 : i32, i32
  }
  func.func @transform_10(%arg0: i32, %arg1: i32) -> (i32, i32) {
    %c0_i32 = arith.constant 0 : i32
    %c0_i32_0 = arith.constant 0 : i32
    %c0_i32_1 = arith.constant 0 : i32
    return %c0_i32, %c0_i32_0 : i32, i32
  }
  func.func @transform_11(%arg0: i32, %arg1: i32) -> (i32, i32, i32) {
    %c0_i32 = arith.constant 0 : i32
    %c0_i32_0 = arith.constant 0 : i32
    return %arg0, %arg1, %c0_i32 : i32, i32, i32
  }
}

</mosaic_0001>

<llo_original>
// kernel: tpu_custom_call.1
$region0: #{tpu_custom_call.1}
  #allocation0 [shape = 'u32[]', space=smem, size = 0x4, offset = 0x4, fixed_abs, tag = 'smem constant byte address 0x4 - core index']
  #allocation1 [shape = 'u32[144,128]{1,0:T(1,128)}', space=vmem, size = 0x12000, scoped, tag = 'internal scratch']
  %s0 = inlined_call_operand.vmem [shape: bf16[2,16,16], index: 0, kind: input, shape index: {}]
  %s1 = inlined_call_operand.vmem [shape: f32[2,16,1], index: 1, kind: input, shape index: {}]
  %s2 = inlined_call_operand.vmem [shape: bf16[2,16,128], index: 2, kind: input, shape index: {}]
  %s3 = inlined_call_operand.vmem [shape: f32[2,1,128], index: 3, kind: input, shape index: {}]
  %s4 = inlined_call_operand.vmem [shape: f32[2,16,16], index: 4, kind: input, shape index: {}]
  %s5 = inlined_call_operand.vmem [shape: bf16[2,128,16], index: 5, kind: input, shape index: {}]
  %s6 = inlined_call_operand.vmem [shape: bf16[16,32], index: 6, kind: input, shape index: {}]
  %s7 = inlined_call_operand.vmem [shape: bf16[16,32], index: 7, kind: input, shape index: {}]
  %s8 = inlined_call_operand.vmem [shape: f32[1,32], index: 8, kind: input, shape index: {}]
  %s9 = inlined_call_operand.vmem [shape: bf16[32,128], index: 9, kind: input, shape index: {}]
  %s10 = inlined_call_operand.vmem [shape: f32[1,128], index: 10, kind: input, shape index: {}]
  %s11 = inlined_call_operand.hbm [shape: f32[2,16,128], index: 11, kind: output, shape index: {}]
  %s12 = sld [smem:[#allocation0]]
  $region77: #{tpu_custom_call.1} parent=0
    _
  %s14 = ssub.s32 1, %s12
  %s15 = scalar_select 0, %s14, %s12
  $region1: #{tpu_custom_call.1} parent=0
    #allocation2 [shape = 'u8[16384]{0}', space=vmem, size = 0x4000, scoped, tag = 'output window, operand 0']
    #allocation3 [shape = 's32[2]{0}', space=sflag, size = 0x8, scoped, tag = 'scoped memory for tpu_custom_call.1']
    %16 = vsyncpa [#allocation3], 0
    %s17 = scalar_lea.sflag [#allocation3], 1
    %18 = vsyncpa %s17, 0
    loop: start=0, step=1, limit=4
    $region2: #{tpu_custom_call.1} parent=1 // loop_pre_header
      _
    $region3: #{tpu_custom_call.1} parent=1 // loop_header
      %s20 = sphi 0, %s24
      %p21 = scmp.ge.s32.totalorder %s20, 4
      %s27 = sphi 0, %s39
      %s28 = sphi 0, %s35
      %s29 = sphi 0, %s27
      %s30 = sphi 0, %s28
      %s31 = sphi 0, %s29
      %s32 = sphi 0, %s30
      %s44 = sphi 0, %s46
      %s47 = sphi 0, %s44
      %s48 = sphi 0, %s47
      %s64 = sphi 0, %s48
      %s72 = sphi 0, %s74
      %s75 = sphi 0, %s72
      %s76 = sphi 0, %s75
      %s92 = sphi 0, %s76
      %s98 = sphi 0, %s100
      %s101 = sphi 0, %s98
      %s102 = sphi 0, %s101
      %s118 = sphi 0, %s102
      %s124 = sphi 0, %s126
      %s127 = sphi 0, %s124
      %s128 = sphi 0, %s127
      %s144 = sphi 0, %s128
      %s152 = sphi 0, %s154
      %s155 = sphi 0, %s152
      %s156 = sphi 0, %s155
      %s172 = sphi 0, %s156
      %s178 = sphi 0, %s180
      %s181 = sphi 0, %s178
      %s182 = sphi 0, %s181
      %s198 = sphi 0, %s182
      %s202 = sphi 0, %s202
      %s204 = sphi 0, %s202
      %s205 = sphi 0, %s204
      %s219 = sphi 0, %s205
      %s223 = sphi 0, %s223
      %s225 = sphi 0, %s223
      %s226 = sphi 0, %s225
      %s240 = sphi 0, %s226
      %s244 = sphi 0, %s244
      %s246 = sphi 0, %s244
      %s247 = sphi 0, %s246
      %s261 = sphi 0, %s247
      %s265 = sphi 0, %s265
      %s267 = sphi 0, %s265
      %s268 = sphi 0, %s267
      %s282 = sphi 0, %s268
      %s286 = sphi 0, %s286
      %s288 = sphi 0, %s286
      %s289 = sphi 0, %s288
      %s303 = sphi 0, %s289
      %s311 = sphi 0, %s313
      %s314 = sphi 0, %s311
      %s315 = sphi 0, %s314
      %s331 = sphi 0, %s315
    $region4: #{tpu_custom_call.1} parent=1 // loop_header_branch
      %23 = sbr.rel (%p21) target = $region8
    $region5: #{tpu_custom_call.1} parent=1 // loop_body
      %s25 = ssub.s32 %s20, 1
      %s26 = ssub.s32 %s20, 2
      %s33 = sadd.s32 1, %s28
      %p34 = scmp.ge.s32.totalorder %s33, 1
      %s35 = scalar_select %p34, 0, %s33
      %s36 = sadd.s32 1, %s27
      %s37 = scalar_select %p34, %s36, %s27
      %p38 = scmp.ge.s32.totalorder %s37, 2
      %s39 = scalar_select %p38, 0, %s37
      %s40 = ssub.s32 %s27, %s39
      %s41 = ssub.s32 %s28, %s35
      %s42 = sor.u32 %s40, %s41
      %p43 = scmp.eq.s32.totalorder %s42, 0
      %s45 = sadd.s32 %s44, 1
      %s46 = scalar_select %p43, %s44, %s45
      %p49 = pneg %p43
      %p50 = scmp.eq.s32.totalorder %s20, 1
      %p51 = por %p49, %p50
      %p52 = scmp.ne.s32.totalorder %s44, %s47
      %p53 = scmp.eq.s32.totalorder %s20, 0
      %p54 = por %p52, %p53
      %p55 = scmp.ne.s32.totalorder %s44, %s47
      %p56 = scmp.eq.s32.totalorder %s25, 1
      %p57 = por %p55, %p56
      %p58 = scmp.ne.s32.totalorder %s47, %s48
      %p59 = scmp.eq.s32.totalorder %s25, 0
      %p60 = por %p58, %p59
      %p61 = scmp.ne.s32.totalorder %s47, %s48
      %p62 = scmp.eq.s32.totalorder %s26, 1
      %p63 = por %p61, %p62
      %p65 = scmp.ne.s32.totalorder %s48, %s64
      %p66 = scmp.eq.s32.totalorder %s26, 0
      %p67 = por %p65, %p66
      %s68 = ssub.s32 %s27, %s39
      %s69 = ssub.s32 %s28, %s35
      %s70 = sor.u32 %s68, %s69
      %p71 = scmp.eq.s32.totalorder %s70, 0
      %s73 = sadd.s32 %s72, 1
      %s74 = scalar_select %p71, %s72, %s73
      %p77 = pneg %p71
      %p78 = scmp.eq.s32.totalorder %s20, 1
      %p79 = por %p77, %p78
      %p80 = scmp.ne.s32.totalorder %s72, %s75
      %p81 = scmp.eq.s32.totalorder %s20, 0
      %p82 = por %p80, %p81
      %p83 = scmp.ne.s32.totalorder %s72, %s75
      %p84 = scmp.eq.s32.totalorder %s25, 1
      %p85 = por %p83, %p84
      %p86 = scmp.ne.s32.totalorder %s75, %s76
      %p87 = scmp.eq.s32.totalorder %s25, 0
      %p88 = por %p86, %p87
      %p89 = scmp.ne.s32.totalorder %s75, %s76
      %p90 = scmp.eq.s32.totalorder %s26, 1
      %p91 = por %p89, %p90
      %p93 = scmp.ne.s32.totalorder %s76, %s92
      %p94 = scmp.eq.s32.totalorder %s26, 0
      %p95 = por %p93, %p94
      %s96 = ssub.s32 %s27, %s39
      %p97 = scmp.eq.s32.totalorder %s96, 0
      %s99 = sadd.s32 %s98, 1
      %s100 = scalar_select %p97, %s98, %s99
      %p103 = pneg %p97
      %p104 = scmp.eq.s32.totalorder %s20, 1
      %p105 = por %p103, %p104
      %p106 = scmp.ne.s32.totalorder %s98, %s101
      %p107 = scmp.eq.s32.totalorder %s20, 0
      %p108 = por %p106, %p107
      %p109 = scmp.ne.s32.totalorder %s98, %s101
      %p110 = scmp.eq.s32.totalorder %s25, 1
      %p111 = por %p109, %p110
      %p112 = scmp.ne.s32.totalorder %s101, %s102
      %p113 = scmp.eq.s32.totalorder %s25, 0
      %p114 = por %p112, %p113
      %p115 = scmp.ne.s32.totalorder %s101, %s102
      %p116 = scmp.eq.s32.totalorder %s26, 1
      %p117 = por %p115, %p116
      %p119 = scmp.ne.s32.totalorder %s102, %s118
      %p120 = scmp.eq.s32.totalorder %s26, 0
      %p121 = por %p119, %p120
      %s122 = ssub.s32 %s27, %s39
      %p123 = scmp.eq.s32.totalorder %s122, 0
      %s125 = sadd.s32 %s124, 1
      %s126 = scalar_select %p123, %s124, %s125
      %p129 = pneg %p123
      %p130 = scmp.eq.s32.totalorder %s20, 1
      %p131 = por %p129, %p130
      %p132 = scmp.ne.s32.totalorder %s124, %s127
      %p133 = scmp.eq.s32.totalorder %s20, 0
      %p134 = por %p132, %p133
      %p135 = scmp.ne.s32.totalorder %s124, %s127
      %p136 = scmp.eq.s32.totalorder %s25, 1
      %p137 = por %p135, %p136
      %p138 = scmp.ne.s32.totalorder %s127, %s128
      %p139 = scmp.eq.s32.totalorder %s25, 0
      %p140 = por %p138, %p139
      %p141 = scmp.ne.s32.totalorder %s127, %s128
      %p142 = scmp.eq.s32.totalorder %s26, 1
      %p143 = por %p141, %p142
      %p145 = scmp.ne.s32.totalorder %s128, %s144
      %p146 = scmp.eq.s32.totalorder %s26, 0
      %p147 = por %p145, %p146
      %s148 = ssub.s32 %s27, %s39
      %s149 = ssub.s32 %s28, %s35
      %s150 = sor.u32 %s148, %s149
      %p151 = scmp.eq.s32.totalorder %s150, 0
      %s153 = sadd.s32 %s152, 1
      %s154 = scalar_select %p151, %s152, %s153
      %p157 = pneg %p151
      %p158 = scmp.eq.s32.totalorder %s20, 1
      %p159 = por %p157, %p158
      %p160 = scmp.ne.s32.totalorder %s152, %s155
      %p161 = scmp.eq.s32.totalorder %s20, 0
      %p162 = por %p160, %p161
      %p163 = scmp.ne.s32.totalorder %s152, %s155
      %p164 = scmp.eq.s32.totalorder %s25, 1
      %p165 = por %p163, %p164
      %p166 = scmp.ne.s32.totalorder %s155, %s156
      %p167 = scmp.eq.s32.totalorder %s25, 0
      %p168 = por %p166, %p167
      %p169 = scmp.ne.s32.totalorder %s155, %s156
      %p170 = scmp.eq.s32.totalorder %s26, 1
      %p171 = por %p169, %p170
      %p173 = scmp.ne.s32.totalorder %s156, %s172
      %p174 = scmp.eq.s32.totalorder %s26, 0
      %p175 = por %p173, %p174
      %s176 = ssub.s32 %s27, %s39
      %p177 = scmp.eq.s32.totalorder %s176, 0
      %s179 = sadd.s32 %s178, 1
      %s180 = scalar_select %p177, %s178, %s179
      %p183 = pneg %p177
      %p184 = scmp.eq.s32.totalorder %s20, 1
      %p185 = por %p183, %p184
      %p186 = scmp.ne.s32.totalorder %s178, %s181
      %p187 = scmp.eq.s32.totalorder %s20, 0
      %p188 = por %p186, %p187
      %p189 = scmp.ne.s32.totalorder %s178, %s181
      %p190 = scmp.eq.s32.totalorder %s25, 1
      %p191 = por %p189, %p190
      %p192 = scmp.ne.s32.totalorder %s181, %s182
      %p193 = scmp.eq.s32.totalorder %s25, 0
      %p194 = por %p192, %p193
      %p195 = scmp.ne.s32.totalorder %s181, %s182
      %p196 = scmp.eq.s32.totalorder %s26, 1
      %p197 = por %p195, %p196
      %p199 = scmp.ne.s32.totalorder %s182, %s198
      %p200 = scmp.eq.s32.totalorder %s26, 0
      %p201 = por %p199, %p200
      %s203 = sadd.s32 %s202, 1
      %p206 = scmp.eq.s32.totalorder %s20, 1
      %p207 = scmp.ne.s32.totalorder %s202, %s204
      %p208 = scmp.eq.s32.totalorder %s20, 0
      %p209 = por %p207, %p208
      %p210 = scmp.ne.s32.totalorder %s202, %s204
      %p211 = scmp.eq.s32.totalorder %s25, 1
      %p212 = por %p210, %p211
      %p213 = scmp.ne.s32.totalorder %s204, %s205
      %p214 = scmp.eq.s32.totalorder %s25, 0
      %p215 = por %p213, %p214
      %p216 = scmp.ne.s32.totalorder %s204, %s205
      %p217 = scmp.eq.s32.totalorder %s26, 1
      %p218 = por %p216, %p217
      %p220 = scmp.ne.s32.totalorder %s205, %s219
      %p221 = scmp.eq.s32.totalorder %s26, 0
      %p222 = por %p220, %p221
      %s224 = sadd.s32 %s223, 1
      %p227 = scmp.eq.s32.totalorder %s20, 1
      %p228 = scmp.ne.s32.totalorder %s223, %s225
      %p229 = scmp.eq.s32.totalorder %s20, 0
      %p230 = por %p228, %p229
      %p231 = scmp.ne.s32.totalorder %s223, %s225
      %p232 = scmp.eq.s32.totalorder %s25, 1
      %p233 = por %p231, %p232
      %p234 = scmp.ne.s32.totalorder %s225, %s226
      %p235 = scmp.eq.s32.totalorder %s25, 0
      %p236 = por %p234, %p235
      %p237 = scmp.ne.s32.totalorder %s225, %s226
      %p238 = scmp.eq.s32.totalorder %s26, 1
      %p239 = por %p237, %p238
      %p241 = scmp.ne.s32.totalorder %s226, %s240
      %p242 = scmp.eq.s32.totalorder %s26, 0
      %p243 = por %p241, %p242
      %s245 = sadd.s32 %s244, 1
      %p248 = scmp.eq.s32.totalorder %s20, 1
      %p249 = scmp.ne.s32.totalorder %s244, %s246
      %p250 = scmp.eq.s32.totalorder %s20, 0
      %p251 = por %p249, %p250
      %p252 = scmp.ne.s32.totalorder %s244, %s246
      %p253 = scmp.eq.s32.totalorder %s25, 1
      %p254 = por %p252, %p253
      %p255 = scmp.ne.s32.totalorder %s246, %s247
      %p256 = scmp.eq.s32.totalorder %s25, 0
      %p257 = por %p255, %p256
      %p258 = scmp.ne.s32.totalorder %s246, %s247
      %p259 = scmp.eq.s32.totalorder %s26, 1
      %p260 = por %p258, %p259
      %p262 = scmp.ne.s32.totalorder %s247, %s261
      %p263 = scmp.eq.s32.totalorder %s26, 0
      %p264 = por %p262, %p263
      %s266 = sadd.s32 %s265, 1
      %p269 = scmp.eq.s32.totalorder %s20, 1
      %p270 = scmp.ne.s32.totalorder %s265, %s267
      %p271 = scmp.eq.s32.totalorder %s20, 0
      %p272 = por %p270, %p271
      %p273 = scmp.ne.s32.totalorder %s265, %s267
      %p274 = scmp.eq.s32.totalorder %s25, 1
      %p275 = por %p273, %p274
      %p276 = scmp.ne.s32.totalorder %s267, %s268
      %p277 = scmp.eq.s32.totalorder %s25, 0
      %p278 = por %p276, %p277
      %p279 = scmp.ne.s32.totalorder %s267, %s268
      %p280 = scmp.eq.s32.totalorder %s26, 1
      %p281 = por %p279, %p280
      %p283 = scmp.ne.s32.totalorder %s268, %s282
      %p284 = scmp.eq.s32.totalorder %s26, 0
      %p285 = por %p283, %p284
      %s287 = sadd.s32 %s286, 1
      %p290 = scmp.eq.s32.totalorder %s20, 1
      %p291 = scmp.ne.s32.totalorder %s286, %s288
      %p292 = scmp.eq.s32.totalorder %s20, 0
      %p293 = por %p291, %p292
      %p294 = scmp.ne.s32.totalorder %s286, %s288
      %p295 = scmp.eq.s32.totalorder %s25, 1
      %p296 = por %p294, %p295
      %p297 = scmp.ne.s32.totalorder %s288, %s289
      %p298 = scmp.eq.s32.totalorder %s25, 0
      %p299 = por %p297, %p298
      %p300 = scmp.ne.s32.totalorder %s288, %s289
      %p301 = scmp.eq.s32.totalorder %s26, 1
      %p302 = por %p300, %p301
      %p304 = scmp.ne.s32.totalorder %s289, %s303
      %p305 = scmp.eq.s32.totalorder %s26, 0
      %p306 = por %p304, %p305
      %s307 = ssub.s32 %s27, %s39
      %s308 = ssub.s32 %s28, %s35
      %s309 = sor.u32 %s307, %s308
      %p310 = scmp.eq.s32.totalorder %s309, 0
      %s312 = sadd.s32 %s311, 1
      %s313 = scalar_select %p310, %s311, %s312
      %p316 = pneg %p310
      %p317 = scmp.eq.s32.totalorder %s20, 1
      %p318 = por %p316, %p317
      %p319 = scmp.ne.s32.totalorder %s311, %s314
      %p320 = scmp.eq.s32.totalorder %s20, 0
      %p321 = por %p319, %p320
      %p322 = scmp.ne.s32.totalorder %s311, %s314
      %p323 = scmp.eq.s32.totalorder %s25, 1
      %p324 = por %p322, %p323
      %p325 = scmp.ne.s32.totalorder %s314, %s315
      %p326 = scmp.eq.s32.totalorder %s25, 0
      %p327 = por %p325, %p326
      %p328 = scmp.ne.s32.totalorder %s314, %s315
      %p329 = scmp.eq.s32.totalorder %s26, 1
      %p330 = por %p328, %p329
      %p332 = scmp.ne.s32.totalorder %s315, %s331
      %p333 = scmp.eq.s32.totalorder %s26, 0
      %p334 = por %p332, %p333
      %p335 = scmp.le.s32.totalorder 1, %s20
      %p336 = scmp.lt.s32.totalorder %s20, 3
      %p337 = pnand %p335, %p336
      %p338 = pneg %p337
      // Predicated region
      $region9: #{tpu_custom_call.1} parent=5 // pred_check
        _
      $region10: #{tpu_custom_call.1} parent=5 // pred_check_branch
        %340 = sbr.rel (%p337) target = $region12
      $region11: #{tpu_custom_call.1} parent=5 // pred_region
        %s341 = ssub.s32 %s20, 1
        // Predicated region
        $region13: #{tpu_custom_call.1} parent=11 // pred_check
          %p342 = pneg %p215
        $region14: #{tpu_custom_call.1} parent=11 // pred_check_branch
          %344 = sbr.rel (%p342) target = $region16
        $region15: #{tpu_custom_call.1} parent=11 // pred_region
          _
        $region16: #{tpu_custom_call.1} parent=11 // pred_fallthru
          _
        // Predicated region
        $region17: #{tpu_custom_call.1} parent=11 // pred_check
          %p345 = pneg %p236
        $region18: #{tpu_custom_call.1} parent=11 // pred_check_branch
          %347 = sbr.rel (%p345) target = $region20
        $region19: #{tpu_custom_call.1} parent=11 // pred_region
          _
        $region20: #{tpu_custom_call.1} parent=11 // pred_fallthru
          _
        // Predicated region
        $region21: #{tpu_custom_call.1} parent=11 // pred_check
          %p348 = pneg %p257
        $region22: #{tpu_custom_call.1} parent=11 // pred_check_branch
          %350 = sbr.rel (%p348) target = $region24
        $region23: #{tpu_custom_call.1} parent=11 // pred_region
          _
        $region24: #{tpu_custom_call.1} parent=11 // pred_fallthru
          _
        // Predicated region
        $region25: #{tpu_custom_call.1} parent=11 // pred_check
          %p351 = pneg %p278
        $region26: #{tpu_custom_call.1} parent=11 // pred_check_branch
          %353 = sbr.rel (%p351) target = $region28
        $region27: #{tpu_custom_call.1} parent=11 // pred_region
          _
        $region28: #{tpu_custom_call.1} parent=11 // pred_fallthru
          _
        // Predicated region
        $region29: #{tpu_custom_call.1} parent=11 // pred_check
          %p354 = pneg %p299
        $region30: #{tpu_custom_call.1} parent=11 // pred_check_branch
          %356 = sbr.rel (%p354) target = $region32
        $region31: #{tpu_custom_call.1} parent=11 // pred_region
          _
        $region32: #{tpu_custom_call.1} parent=11 // pred_fallthru
          _
      $region12: #{tpu_custom_call.1} parent=5 // pred_fallthru
        _
      %p357 = scmp.lt.s32.totalorder %s20, 2
      // Predicated region
      $region33: #{tpu_custom_call.1} parent=5 // pred_check
        %p358 = pneg %p357
      $region34: #{tpu_custom_call.1} parent=5 // pred_check_branch
        %360 = sbr.rel (%p358) target = $region36
      $region35: #{tpu_custom_call.1} parent=5 // pred_region
        // Predicated region
        $region37: #{tpu_custom_call.1} parent=35 // pred_check
          %p361 = pneg %p54
        $region38: #{tpu_custom_call.1} parent=35 // pred_check_branch
          %363 = sbr.rel (%p361) target = $region40
        $region39: #{tpu_custom_call.1} parent=35 // pred_region
          %s364 = smul.u32 2, %s28
          %p365 = scmp.lt.s32.totalorder %s27, 1
          %s366 = scalar_select %p365, %s27, 1
          %p367 = scmp.lt.s32.totalorder %s364, 1
          %s368 = scalar_select %p367, %s364, 1
          %s369 = smul.addr %s366, 2
          %s370 = sadd.s32 %s368, %s369
          %s371 = smul.addr %s370, 4
          %s372 = scalar_lea.vmem %s0, %s371
          %s373 = smul.u32 2, %s28
        $region40: #{tpu_custom_call.1} parent=35 // pred_fallthru
          _
        // Predicated region
        $region41: #{tpu_custom_call.1} parent=35 // pred_check
          %p374 = pneg %p82
        $region42: #{tpu_custom_call.1} parent=35 // pred_check_branch
          %376 = sbr.rel (%p374) target = $region44
        $region43: #{tpu_custom_call.1} parent=35 // pred_region
          %s377 = smul.u32 2, %s28
          %p378 = scmp.lt.s32.totalorder %s27, 1
          %s379 = scalar_select %p378, %s27, 1
          %p380 = scmp.lt.s32.totalorder %s377, 1
          %s381 = scalar_select %p380, %s377, 1
          %s382 = smul.addr %s379, 2
          %s383 = sadd.s32 %s381, %s382
          %s384 = smul.addr %s383, 8
          %s385 = scalar_lea.vmem %s1, %s384
          %s386 = smul.u32 2, %s28
        $region44: #{tpu_custom_call.1} parent=35 // pred_fallthru
          _
        // Predicated region
        $region45: #{tpu_custom_call.1} parent=35 // pred_check
          %p387 = pneg %p108
        $region46: #{tpu_custom_call.1} parent=35 // pred_check_branch
          %389 = sbr.rel (%p387) target = $region48
        $region47: #{tpu_custom_call.1} parent=35 // pred_region
          %p390 = scmp.lt.s32.totalorder %s27, 1
          %s391 = scalar_select %p390, %s27, 1
          %s392 = smul.addr %s391, 2
          %s393 = smul.addr %s392, 4
          %s394 = scalar_lea.vmem %s2, %s393
        $region48: #{tpu_custom_call.1} parent=35 // pred_fallthru
          _
        // Predicated region
        $region49: #{tpu_custom_call.1} parent=35 // pred_check
          %p395 = pneg %p134
        $region50: #{tpu_custom_call.1} parent=35 // pred_check_branch
          %397 = sbr.rel (%p395) target = $region52
        $region51: #{tpu_custom_call.1} parent=35 // pred_region
          %p398 = scmp.lt.s32.totalorder %s27, 1
          %s399 = scalar_select %p398, %s27, 1
          %s400 = scalar_lea.vmem %s3, %s399
        $region52: #{tpu_custom_call.1} parent=35 // pred_fallthru
          _
        // Predicated region
        $region53: #{tpu_custom_call.1} parent=35 // pred_check
          %p401 = pneg %p162
        $region54: #{tpu_custom_call.1} parent=35 // pred_check_branch
          %403 = sbr.rel (%p401) target = $region56
        $region55: #{tpu_custom_call.1} parent=35 // pred_region
          %s404 = smul.u32 2, %s28
          %p405 = scmp.lt.s32.totalorder %s27, 1
          %s406 = scalar_select %p405, %s27, 1
          %p407 = scmp.lt.s32.totalorder %s404, 1
          %s408 = scalar_select %p407, %s404, 1
          %s409 = smul.addr %s406, 2
          %s410 = sadd.s32 %s408, %s409
          %s411 = smul.addr %s410, 8
          %s412 = scalar_lea.vmem %s4, %s411
          %s413 = smul.u32 2, %s28
        $region56: #{tpu_custom_call.1} parent=35 // pred_fallthru
          _
        // Predicated region
        $region57: #{tpu_custom_call.1} parent=35 // pred_check
          %p414 = pneg %p188
        $region58: #{tpu_custom_call.1} parent=35 // pred_check_branch
          %416 = sbr.rel (%p414) target = $region60
        $region59: #{tpu_custom_call.1} parent=35 // pred_region
          %p417 = scmp.lt.s32.totalorder %s27, 1
          %s418 = scalar_select %p417, %s27, 1
          %s419 = smul.addr %s418, 16
          %s420 = smul.addr %s419, 4
          %s421 = scalar_lea.vmem %s5, %s420
        $region60: #{tpu_custom_call.1} parent=35 // pred_fallthru
          _
      $region36: #{tpu_custom_call.1} parent=5 // pred_fallthru
        _
      %p422 = scmp.le.s32.totalorder 1, %s20
      %p423 = scmp.lt.s32.totalorder %s20, 3
      %p424 = pnand %p422, %p423
      %p425 = pneg %p424
      // Predicated region
      $region61: #{tpu_custom_call.1} parent=5 // pred_check
        _
      $region62: #{tpu_custom_call.1} parent=5 // pred_check_branch
        %427 = sbr.rel (%p424) target = $region64
      $region63: #{tpu_custom_call.1} parent=5 // pred_region
        %s428 = ssub.s32 %s20, 1
        %s429 = smul.u32 2, %s30
        %p430 = scmp.lt.s32.totalorder %s29, 1
        %s431 = scalar_select %p430, %s29, 1
        %p432 = scmp.lt.s32.totalorder %s429, 1
        %s433 = scalar_select %p432, %s429, 1
        %s434 = smul.addr %s431, 2
        %s435 = sadd.s32 %s433, %s434
        %s436 = smul.addr %s435, 4
        %s437 = scalar_lea.vmem %s0, %s436
        %p438 = pneg %p60
        %p439 = pneg %p57
        %s440 = smul.u32 2, %s30
        %p441 = scmp.lt.s32.totalorder %s29, 1
        %s442 = scalar_select %p441, %s29, 1
        %p443 = scmp.lt.s32.totalorder %s440, 1
        %s444 = scalar_select %p443, %s440, 1
        %s445 = smul.addr %s442, 2
        %s446 = sadd.s32 %s444, %s445
        %s447 = smul.addr %s446, 8
        %s448 = scalar_lea.vmem %s1, %s447
        %p449 = pneg %p88
        %p450 = pneg %p85
        %p451 = scmp.lt.s32.totalorder %s29, 1
        %s452 = scalar_select %p451, %s29, 1
        %s453 = smul.addr %s452, 2
        %s454 = smul.addr %s453, 4
        %s455 = scalar_lea.vmem %s2, %s454
        %p456 = pneg %p114
        %p457 = pneg %p111
        %p458 = scmp.lt.s32.totalorder %s29, 1
        %s459 = scalar_select %p458, %s29, 1
        %s460 = scalar_lea.vmem %s3, %s459
        %p461 = pneg %p140
        %p462 = pneg %p137
        %s463 = smul.u32 2, %s30
        %p464 = scmp.lt.s32.totalorder %s29, 1
        %s465 = scalar_select %p464, %s29, 1
        %p466 = scmp.lt.s32.totalorder %s463, 1
        %s467 = scalar_select %p466, %s463, 1
        %s468 = smul.addr %s465, 2
        %s469 = sadd.s32 %s467, %s468
        %s470 = smul.addr %s469, 8
        %s471 = scalar_lea.vmem %s4, %s470
        %p472 = pneg %p168
        %p473 = pneg %p165
        %p474 = scmp.lt.s32.totalorder %s29, 1
        %s475 = scalar_select %p474, %s29, 1
        %s476 = smul.addr %s475, 16
        %s477 = smul.addr %s476, 4
        %s478 = scalar_lea.vmem %s5, %s477
        %p479 = pneg %p194
        %p480 = pneg %p191
        %p481 = pneg %p215
        %p482 = pneg %p212
        %p483 = pneg %p236
        %p484 = pneg %p233
        %p485 = pneg %p257
        %p486 = pneg %p254
        %p487 = pneg %p278
        %p488 = pneg %p275
        %p489 = pneg %p299
        %p490 = pneg %p296
        %p491 = pneg %p327
        %p492 = pneg %p324
        %s493 = sand.u32 %s314, 1
        %s494 = scalar_lea.sflag [#allocation3], %s493
        %s495 = sand.u32 %s314, 1
        %s496 = smul.addr %s495, 16
        %s497 = scalar_lea.vmem [#allocation2], %s496
        %s498 = smul.u32 2, %s30
        %p499 = scmp.lt.s32.totalorder %s29, 1
        %s500 = scalar_select %p499, %s29, 1
        %p501 = scmp.lt.s32.totalorder %s498, 1
        %s502 = scalar_select %p501, %s498, 1
        %s503 = smul.addr %s500, 2
        %s504 = sadd.s32 %s502, %s503
        %s505 = smul.addr %s504, 4
        %s506 = scalar_lea.vmem %s0, %s505
        %s507 = smul.u32 2, %s30
        %s508 = smul.u32 2, %s30
        %p509 = scmp.lt.s32.totalorder %s29, 1
        %s510 = scalar_select %p509, %s29, 1
        %p511 = scmp.lt.s32.totalorder %s508, 1
        %s512 = scalar_select %p511, %s508, 1
        %s513 = smul.addr %s510, 2
        %s514 = sadd.s32 %s512, %s513
        %s515 = smul.addr %s514, 8
        %s516 = scalar_lea.vmem %s1, %s515
        %s517 = smul.u32 2, %s30
        %p518 = scmp.lt.s32.totalorder %s29, 1
        %s519 = scalar_select %p518, %s29, 1
        %s520 = smul.addr %s519, 2
        %s521 = smul.addr %s520, 4
        %s522 = scalar_lea.vmem %s2, %s521
        %p523 = scmp.lt.s32.totalorder %s29, 1
        %s524 = scalar_select %p523, %s29, 1
        %s525 = scalar_lea.vmem %s3, %s524
        %s526 = smul.u32 2, %s30
        %p527 = scmp.lt.s32.totalorder %s29, 1
        %s528 = scalar_select %p527, %s29, 1
        %p529 = scmp.lt.s32.totalorder %s526, 1
        %s530 = scalar_select %p529, %s526, 1
        %s531 = smul.addr %s528, 2
        %s532 = sadd.s32 %s530, %s531
        %s533 = smul.addr %s532, 8
        %s534 = scalar_lea.vmem %s4, %s533
        %s535 = smul.u32 2, %s30
        %p536 = scmp.lt.s32.totalorder %s29, 1
        %s537 = scalar_select %p536, %s29, 1
        %s538 = smul.addr %s537, 16
        %s539 = smul.addr %s538, 4
        %s540 = scalar_lea.vmem %s5, %s539
        %s541 = smul.u32 2, %s30
        %v543 = vld [vmem:[%s506] sm:$0xf]
        %v544 = vld [vmem:[%s506 + $0x4] sm:$0xf]
        %v545 = vld [vmem:[%s522] sm:$0xf]
        %v546 = vld [vmem:[%s522 + $0x4] sm:$0xf]
        %v547 = vld [vmem:[%s516] sm:$0xff]
        %v548 = vld [vmem:[%s516 + $0x8] sm:$0xff]
        %v549 = vld [vmem:[%s525] sm:$0x1]
        %v550 = vld [vmem:[%s540] sm:$0xf]
        %v551 = vld [vmem:[%s540 + $0x4] sm:$0xf]
        %v552 = vld [vmem:[%s540 + $0x8] sm:$0xf]
        %v553 = vld [vmem:[%s540 + $0xc] sm:$0xf]
        %v554 = vld [vmem:[%s540 + $0x10] sm:$0xf]
        %v555 = vld [vmem:[%s540 + $0x14] sm:$0xf]
        %v556 = vld [vmem:[%s540 + $0x18] sm:$0xf]
        %v557 = vld [vmem:[%s540 + $0x1c] sm:$0xf]
        %v558 = vld [vmem:[%s540 + $0x20] sm:$0xf]
        %v559 = vld [vmem:[%s540 + $0x24] sm:$0xf]
        %v560 = vld [vmem:[%s540 + $0x28] sm:$0xf]
        %v561 = vld [vmem:[%s540 + $0x2c] sm:$0xf]
        %v562 = vld [vmem:[%s540 + $0x30] sm:$0xf]
        %v563 = vld [vmem:[%s540 + $0x34] sm:$0xf]
        %v564 = vld [vmem:[%s540 + $0x38] sm:$0xf]
        %v565 = vld [vmem:[%s540 + $0x3c] sm:$0xf]
        %v568 = vunpack.c.l.b16 %v543
        %v569 = vunpack.c.l.b16 %v544
        %v570 = vpack.c.b16 %v569, %v568
        %v573 = vunpack.c.l.b16 %v545
        %v574 = vunpack.c.l.b16 %v546
        %v575 = vpack.c.b16 %v574, %v573
        %vm577 = vcmask 130048
        %v579 = vsel %vm577, %v570, 0
        %581 = vmatprep.subr.bf16.mxu0 0
        %582 = vmatpush1.bf16.msra.mxu0 %v575
        %583 = vmatprep.subr.bf16.mxu0 0
        %584 = vmatpush1.bf16.msra.mxu0 0
        %585 = vmatprep.subr.bf16.mxu0 0
        %586 = vmatpush1.bf16.msra.mxu0 0
        %587 = vmatprep.subr.bf16.mxu0 0
        %588 = vmatpush1.bf16.msra.mxu0 0
        %589 = vmatprep.subr.bf16.mxu0 0
        %590 = vmatpush1.bf16.msra.mxu0 0
        %591 = vmatprep.subr.bf16.mxu0 0
        %592 = vmatpush1.bf16.msra.mxu0 0
        %593 = vmatprep.subr.bf16.mxu0 0
        %594 = vmatpush1.bf16.msra.mxu0 0
        %595 = vmatprep.subr.bf16.mxu0 0
        %596 = vmatpush1.bf16.msra.mxu0 0
        %597 = vmatprep.subr.bf16.mxu0 0
        %598 = vmatpush1.bf16.msra.mxu0 0
        %599 = vmatprep.subr.bf16.mxu0 0
        %600 = vmatpush1.bf16.msra.mxu0 0
        %601 = vmatprep.subr.bf16.mxu0 0
        %602 = vmatpush1.bf16.msra.mxu0 0
        %603 = vmatprep.subr.bf16.mxu0 0
        %604 = vmatpush1.bf16.msra.mxu0 0
        %605 = vmatprep.subr.bf16.mxu0 0
        %606 = vmatpush1.bf16.msra.mxu0 0
        %607 = vmatprep.subr.bf16.mxu0 0
        %608 = vmatpush1.bf16.msra.mxu0 0
        %609 = vmatprep.subr.bf16.mxu0 0
        %610 = vmatpush1.bf16.msra.mxu0 0
        %611 = vmatprep.subr.bf16.mxu0 0
        %612 = vmatpush1.bf16.msra.mxu0 0
        %613 = vmatprep.mubr.bf16.mxu0 0
        %614 = vmatmul.mubr.bf16.gmra.mrb[0].mxu0 %v579
        %v615 = vpop.f32.mrb[0].mxu0
        %v616 = vadd.f32 0.0, %v615
        %v617 = vpop.f32.mrb[0].mxu0
        %v618 = vpop.f32.mrb[0].mxu0
        %v619 = vadd.f32 0.0, %v618
        %v620 = vpop.f32.mrb[0].mxu0
        %621 = vdwg.mxu0
        %v622 = vmul.f32 %v616, 2.0
        %v623 = vmul.f32 %v619, 2.0
        %625 = vset.pattern.permute.xlu0 0
        %626 = vperm.xlu0 %625, %v547
        %v627 = vpop.permute.xlu0 %626
        %630 = vset.pattern.permute.xlu0 0
        %631 = vperm.xlu0 %630, %v548
        %v632 = vpop.permute.xlu0 %631
        %v634 = vsub.f32 %v627, %v622
        %v635 = vsub.f32 %v632, %v623
        %v637 = vlaneseq
        %v638 = vshrl.u32 %v637, 7
        %v639 = vsub.s32 0, %v638
        %v640 = vrot.slane %v549, %v639
        %v642 = vadd.f32 %v634, %v640
        %v643 = vadd.f32 %v635, %v640
        %v644 = vmax.f32 %v642, 1e-12
        %v645 = vmax.f32 %v643, 1e-12
        %v646 = vlaneseq
        %v647 = vand.u32 %v646, 127
        %v648 = vand.u32 %v647, 7
        %v651 = vand.u32 %v644, 4294967288
        %v652 = vand.u32 %v645, 4294967288
        %v653 = vor.u32 %v651, %v648
        %v654 = vor.u32 %v652, %v648
        %657 = vmin.xlane.f32.xlu0 %v653
        %v658 = vpop.xlane.xlu0 %657
        %659 = vmin.xlane.f32.xlu0 %v654
        %v660 = vpop.xlane.xlu0 %659
        %v663 = vand.u32 %v658, 7
        %v664 = vand.u32 %v660, 7
        %v665 = vand.u32 %v658, 4294967288
        %v666 = vand.u32 %v660, 4294967288
        %vm669 = vcmp.eq.s32.totalorder %v648, %v663
        %vm670 = vcmp.eq.s32.totalorder %v648, %v664
        %v671 = vadd.f32 %v665, 1e-08
        %v672 = vadd.f32 %v666, 1e-08
        %v673 = vrcp.pop %v671
        %v674 = vmul.f32 1.0, %v673
        %v675 = vrcp.pop %v672
        %v676 = vmul.f32 1.0, %v675
        %v677 = vsel %vm669, 1, 0
        %v678 = vsel %vm670, 1, 0
        %v679 = vcvt.s32.f32 %v677
        %v680 = vcvt.s32.f32 %v678
        %v681 = vpack.c.bf16 %v680, %v679
        %v698 = vunpack.c.l.b16 %v550
        %v699 = vunpack.c.l.b16 %v551
        %v700 = vunpack.c.l.b16 %v552
        %v701 = vunpack.c.l.b16 %v553
        %v702 = vunpack.c.l.b16 %v554
        %v703 = vunpack.c.l.b16 %v555
        %v704 = vunpack.c.l.b16 %v556
        %v705 = vunpack.c.l.b16 %v557
        %v706 = vunpack.c.l.b16 %v558
        %v707 = vunpack.c.l.b16 %v559
        %v708 = vunpack.c.l.b16 %v560
        %v709 = vunpack.c.l.b16 %v561
        %v710 = vunpack.c.l.b16 %v562
        %v711 = vunpack.c.l.b16 %v563
        %v712 = vunpack.c.l.b16 %v564
        %v713 = vunpack.c.l.b16 %v565
        %v714 = vpack.c.b16 %v699, %v698
        %v715 = vpack.c.b16 %v701, %v700
        %v716 = vpack.c.b16 %v703, %v702
        %v717 = vpack.c.b16 %v705, %v704
        %v718 = vpack.c.b16 %v707, %v706
        %v719 = vpack.c.b16 %v709, %v708
        %v720 = vpack.c.b16 %v711, %v710
        %v721 = vpack.c.b16 %v713, %v712
        %730 = vmatprep.subr.bf16.mxu0 0
        %731 = vmatpush1.bf16.msra.mxu0 %v714
        %732 = vmatprep.subr.bf16.mxu0 0
        %733 = vmatpush1.bf16.msra.mxu0 %v715
        %734 = vmatprep.subr.bf16.mxu0 0
        %735 = vmatpush1.bf16.msra.mxu0 %v716
        %736 = vmatprep.subr.bf16.mxu0 0
        %737 = vmatpush1.bf16.msra.mxu0 %v717
        %738 = vmatprep.subr.bf16.mxu0 0
        %739 = vmatpush1.bf16.msra.mxu0 %v718
        %740 = vmatprep.subr.bf16.mxu0 0
        %741 = vmatpush1.bf16.msra.mxu0 %v719
        %742 = vmatprep.subr.bf16.mxu0 0
        %743 = vmatpush1.bf16.msra.mxu0 %v720
        %744 = vmatprep.subr.bf16.mxu0 0
        %745 = vmatpush1.bf16.msra.mxu0 %v721
        %746 = vmatprep.subr.bf16.mxu0 0
        %747 = vmatpush1.bf16.msra.mxu0 0
        %748 = vmatprep.subr.bf16.mxu0 0
        %749 = vmatpush1.bf16.msra.mxu0 0
        %750 = vmatprep.subr.bf16.mxu0 0
        %751 = vmatpush1.bf16.msra.mxu0 0
        %752 = vmatprep.subr.bf16.mxu0 0
        %753 = vmatpush1.bf16.msra.mxu0 0
        %754 = vmatprep.subr.bf16.mxu0 0
        %755 = vmatpush1.bf16.msra.mxu0 0
        %756 = vmatprep.subr.bf16.mxu0 0
        %757 = vmatpush1.bf16.msra.mxu0 0
        %758 = vmatprep.subr.bf16.mxu0 0
        %759 = vmatpush1.bf16.msra.mxu0 0
        %760 = vmatprep.subr.bf16.mxu0 0
        %761 = vmatpush1.bf16.msra.mxu0 0
        %762 = vmatprep.mubr.bf16.mxu0 0
        %763 = vmatmul.mubr.bf16.gmra.mrb[0].mxu0 %v681
        %v764 = vpop.f32.mrb[0].mxu0
        %v765 = vadd.f32 0.0, %v764
        %v766 = vpop.f32.mrb[0].mxu0
        %v767 = vpop.f32.mrb[0].mxu0
        %v768 = vadd.f32 0.0, %v767
        %v769 = vpop.f32.mrb[0].mxu0
        %770 = vdwg.mxu0
        %v771 = vmul.f32 %v674, %v765
        %v772 = vmul.f32 %v676, %v768
        %v773 = vadd.f32 %v771, 0.0
        %v774 = vadd.f32 %v772, 0.0
        %v775 = vadd.f32 %v674, 0.0
        %v776 = vadd.f32 %v676, 0.0
        %v777 = vsel %vm669, 1e+30, %v653
        %v778 = vsel %vm670, 1e+30, %v654
        %779 = vmin.xlane.f32.xlu0 %v777
        %v780 = vpop.xlane.xlu0 %779
        %781 = vmin.xlane.f32.xlu0 %v778
        %v782 = vpop.xlane.xlu0 %781
        %v785 = vand.u32 %v780, 7
        %v786 = vand.u32 %v782, 7
        %v787 = vand.u32 %v780, 4294967288
        %v788 = vand.u32 %v782, 4294967288
        %vm791 = vcmp.eq.s32.totalorder %v648, %v785
        %vm792 = vcmp.eq.s32.totalorder %v648, %v786
        %v793 = vadd.f32 %v787, 1e-08
        %v794 = vadd.f32 %v788, 1e-08
        %v795 = vrcp.pop %v793
        %v796 = vmul.f32 1.0, %v795
        %v797 = vrcp.pop %v794
        %v798 = vmul.f32 1.0, %v797
        %v799 = vsel %vm791, 1, 0
        %v800 = vsel %vm792, 1, 0
        %v801 = vcvt.s32.f32 %v799
        %v802 = vcvt.s32.f32 %v800
        %v803 = vpack.c.bf16 %v802, %v801
        %804 = vmatprep.subr.bf16.mxu0 0
        %805 = vmatpush1.bf16.msra.mxu0 %v714
        %806 = vmatprep.subr.bf16.mxu0 0
        %807 = vmatpush1.bf16.msra.mxu0 %v715
        %808 = vmatprep.subr.bf16.mxu0 0
        %809 = vmatpush1.bf16.msra.mxu0 %v716
        %810 = vmatprep.subr.bf16.mxu0 0
        %811 = vmatpush1.bf16.msra.mxu0 %v717
        %812 = vmatprep.subr.bf16.mxu0 0
        %813 = vmatpush1.bf16.msra.mxu0 %v718
        %814 = vmatprep.subr.bf16.mxu0 0
        %815 = vmatpush1.bf16.msra.mxu0 %v719
        %816 = vmatprep.subr.bf16.mxu0 0
        %817 = vmatpush1.bf16.msra.mxu0 %v720
        %818 = vmatprep.subr.bf16.mxu0 0
        %819 = vmatpush1.bf16.msra.mxu0 %v721
        %820 = vmatprep.subr.bf16.mxu0 0
        %821 = vmatpush1.bf16.msra.mxu0 0
        %822 = vmatprep.subr.bf16.mxu0 0
        %823 = vmatpush1.bf16.msra.mxu0 0
        %824 = vmatprep.subr.bf16.mxu0 0
        %825 = vmatpush1.bf16.msra.mxu0 0
        %826 = vmatprep.subr.bf16.mxu0 0
        %827 = vmatpush1.bf16.msra.mxu0 0
        %828 = vmatprep.subr.bf16.mxu0 0
        %829 = vmatpush1.bf16.msra.mxu0 0
        %830 = vmatprep.subr.bf16.mxu0 0
        %831 = vmatpush1.bf16.msra.mxu0 0
        %832 = vmatprep.subr.bf16.mxu0 0
        %833 = vmatpush1.bf16.msra.mxu0 0
        %834 = vmatprep.subr.bf16.mxu0 0
        %835 = vmatpush1.bf16.msra.mxu0 0
        %836 = vmatprep.mubr.bf16.mxu0 0
        %837 = vmatmul.mubr.bf16.gmra.mrb[0].mxu0 %v803
        %v838 = vpop.f32.mrb[0].mxu0
        %v839 = vadd.f32 0.0, %v838
        %v840 = vpop.f32.mrb[0].mxu0
        %v841 = vpop.f32.mrb[0].mxu0
        %v842 = vadd.f32 0.0, %v841
        %v843 = vpop.f32.mrb[0].mxu0
        %844 = vdwg.mxu0
        %v845 = vmul.f32 %v796, %v839
        %v846 = vmul.f32 %v798, %v842
        %v847 = vadd.f32 %v773, %v845
        %v848 = vadd.f32 %v774, %v846
        %v849 = vadd.f32 %v775, %v796
        %v850 = vadd.f32 %v776, %v798
        %v851 = vsel %vm791, 1e+30, %v777
        %v852 = vsel %vm792, 1e+30, %v778
        %853 = vmin.xlane.f32.xlu0 %v851
        %v854 = vpop.xlane.xlu0 %853
        %855 = vmin.xlane.f32.xlu0 %v852
        %v856 = vpop.xlane.xlu0 %855
        %v859 = vand.u32 %v854, 7
        %v860 = vand.u32 %v856, 7
        %v861 = vand.u32 %v854, 4294967288
        %v862 = vand.u32 %v856, 4294967288
        %vm865 = vcmp.eq.s32.totalorder %v648, %v859
        %vm866 = vcmp.eq.s32.totalorder %v648, %v860
        %v867 = vadd.f32 %v861, 1e-08
        %v868 = vadd.f32 %v862, 1e-08
        %v869 = vrcp.pop %v867
        %v870 = vmul.f32 1.0, %v869
        %v871 = vrcp.pop %v868
        %v872 = vmul.f32 1.0, %v871
        %v873 = vsel %vm865, 1, 0
        %v874 = vsel %vm866, 1, 0
        %v875 = vcvt.s32.f32 %v873
        %v876 = vcvt.s32.f32 %v874
        %v877 = vpack.c.bf16 %v876, %v875
        %878 = vmatprep.subr.bf16.mxu0 0
        %879 = vmatpush1.bf16.msra.mxu0 %v714
        %880 = vmatprep.subr.bf16.mxu0 0
        %881 = vmatpush1.bf16.msra.mxu0 %v715
        %882 = vmatprep.subr.bf16.mxu0 0
        %883 = vmatpush1.bf16.msra.mxu0 %v716
        %884 = vmatprep.subr.bf16.mxu0 0
        %885 = vmatpush1.bf16.msra.mxu0 %v717
        %886 = vmatprep.subr.bf16.mxu0 0
        %887 = vmatpush1.bf16.msra.mxu0 %v718
        %888 = vmatprep.subr.bf16.mxu0 0
        %889 = vmatpush1.bf16.msra.mxu0 %v719
        %890 = vmatprep.subr.bf16.mxu0 0
        %891 = vmatpush1.bf16.msra.mxu0 %v720
        %892 = vmatprep.subr.bf16.mxu0 0
        %893 = vmatpush1.bf16.msra.mxu0 %v721
        %894 = vmatprep.subr.bf16.mxu0 0
        %895 = vmatpush1.bf16.msra.mxu0 0
        %896 = vmatprep.subr.bf16.mxu0 0
        %897 = vmatpush1.bf16.msra.mxu0 0
        %898 = vmatprep.subr.bf16.mxu0 0
        %899 = vmatpush1.bf16.msra.mxu0 0
        %900 = vmatprep.subr.bf16.mxu0 0
        %901 = vmatpush1.bf16.msra.mxu0 0
        %902 = vmatprep.subr.bf16.mxu0 0
        %903 = vmatpush1.bf16.msra.mxu0 0
        %904 = vmatprep.subr.bf16.mxu0 0
        %905 = vmatpush1.bf16.msra.mxu0 0
        %906 = vmatprep.subr.bf16.mxu0 0
        %907 = vmatpush1.bf16.msra.mxu0 0
        %908 = vmatprep.subr.bf16.mxu0 0
        %909 = vmatpush1.bf16.msra.mxu0 0
        %910 = vmatprep.mubr.bf16.mxu0 0
        %911 = vmatmul.mubr.bf16.gmra.mrb[0].mxu0 %v877
        %v912 = vpop.f32.mrb[0].mxu0
        %v913 = vadd.f32 0.0, %v912
        %v914 = vpop.f32.mrb[0].mxu0
        %v915 = vpop.f32.mrb[0].mxu0
        %v916 = vadd.f32 0.0, %v915
        %v917 = vpop.f32.mrb[0].mxu0
        %918 = vdwg.mxu0
        %v919 = vmul.f32 %v870, %v913
        %v920 = vmul.f32 %v872, %v916
        %v921 = vadd.f32 %v847, %v919
        %v922 = vadd.f32 %v848, %v920
        %v923 = vadd.f32 %v849, %v870
        %v924 = vadd.f32 %v850, %v872
        %v925 = vrcp.pop %v923
        %v926 = vmul.f32 1.0, %v925
        %v927 = vrcp.pop %v924
        %v928 = vmul.f32 1.0, %v927
        %v929 = vmul.f32 %v921, %v926
        %v930 = vmul.f32 %v922, %v928
        %v931 = vld [vmem:[%s534] sm:$0xff]
        %v932 = vld [vmem:[%s534 + $0x8] sm:$0xff]
        %v933 = vpack.c.bf16 %v932, %v931
        %v934 = vld [vmem:[%s6] sm:$0xf]
        %v935 = vld [vmem:[%s6 + $0x4] sm:$0xf]
        %v936 = vpack.c.bf16 %v930, %v929
        %v937 = vld [vmem:[%s7] sm:$0xf]
        %v938 = vld [vmem:[%s7 + $0x4] sm:$0xf]
        %v941 = vunpack.c.l.b16 %v937
        %v942 = vunpack.c.l.b16 %v938
        %v943 = vpack.c.b16 %v942, %v941
        %v946 = vsel %vm577, %v936, 0
        %948 = vmatprep.subr.bf16.mxu0 0
        %949 = vmatpush1.bf16.msra.mxu0 %v943
        %950 = vmatprep.subr.bf16.mxu0 0
        %951 = vmatpush1.bf16.msra.mxu0 0
        %952 = vmatprep.subr.bf16.mxu0 0
        %953 = vmatpush1.bf16.msra.mxu0 0
        %954 = vmatprep.subr.bf16.mxu0 0
        %955 = vmatpush1.bf16.msra.mxu0 0
        %956 = vmatprep.subr.bf16.mxu0 0
        %957 = vmatpush1.bf16.msra.mxu0 0
        %958 = vmatprep.subr.bf16.mxu0 0
        %959 = vmatpush1.bf16.msra.mxu0 0
        %960 = vmatprep.subr.bf16.mxu0 0
        %961 = vmatpush1.bf16.msra.mxu0 0
        %962 = vmatprep.subr.bf16.mxu0 0
        %963 = vmatpush1.bf16.msra.mxu0 0
        %964 = vmatprep.subr.bf16.mxu0 0
        %965 = vmatpush1.bf16.msra.mxu0 0
        %966 = vmatprep.subr.bf16.mxu0 0
        %967 = vmatpush1.bf16.msra.mxu0 0
        %968 = vmatprep.subr.bf16.mxu0 0
        %969 = vmatpush1.bf16.msra.mxu0 0
        %970 = vmatprep.subr.bf16.mxu0 0
        %971 = vmatpush1.bf16.msra.mxu0 0
        %972 = vmatprep.subr.bf16.mxu0 0
        %973 = vmatpush1.bf16.msra.mxu0 0
        %974 = vmatprep.subr.bf16.mxu0 0
        %975 = vmatpush1.bf16.msra.mxu0 0
        %976 = vmatprep.subr.bf16.mxu0 0
        %977 = vmatpush1.bf16.msra.mxu0 0
        %978 = vmatprep.subr.bf16.mxu0 0
        %979 = vmatpush1.bf16.msra.mxu0 0
        %980 = vmatprep.mubr.bf16.mxu0 0
        %981 = vmatmul.mubr.bf16.gmra.mrb[0].mxu0 %v946
        %v982 = vpop.f32.mrb[0].mxu0
        %v983 = vadd.f32 0.0, %v982
        %v984 = vpop.f32.mrb[0].mxu0
        %v985 = vpop.f32.mrb[0].mxu0
        %v986 = vadd.f32 0.0, %v985
        %v987 = vpop.f32.mrb[0].mxu0
        %988 = vdwg.mxu0
        %v991 = vunpack.c.l.b16 %v934
        %v992 = vunpack.c.l.b16 %v935
        %v993 = vpack.c.b16 %v992, %v991
        %v996 = vsel %vm577, %v933, 0
        %998 = vmatprep.subr.bf16.mxu0 0
        %999 = vmatpush1.bf16.msra.mxu0 %v993
        %1000 = vmatprep.subr.bf16.mxu0 0
        %1001 = vmatpush1.bf16.msra.mxu0 0
        %1002 = vmatprep.subr.bf16.mxu0 0
        %1003 = vmatpush1.bf16.msra.mxu0 0
        %1004 = vmatprep.subr.bf16.mxu0 0
        %1005 = vmatpush1.bf16.msra.mxu0 0
        %1006 = vmatprep.subr.bf16.mxu0 0
        %1007 = vmatpush1.bf16.msra.mxu0 0
        %1008 = vmatprep.subr.bf16.mxu0 0
        %1009 = vmatpush1.bf16.msra.mxu0 0
        %1010 = vmatprep.subr.bf16.mxu0 0
        %1011 = vmatpush1.bf16.msra.mxu0 0
        %1012 = vmatprep.subr.bf16.mxu0 0
        %1013 = vmatpush1.bf16.msra.mxu0 0
        %1014 = vmatprep.subr.bf16.mxu0 0
        %1015 = vmatpush1.bf16.msra.mxu0 0
        %1016 = vmatprep.subr.bf16.mxu0 0
        %1017 = vmatpush1.bf16.msra.mxu0 0
        %1018 = vmatprep.subr.bf16.mxu0 0
        %1019 = vmatpush1.bf16.msra.mxu0 0
        %1020 = vmatprep.subr.bf16.mxu0 0
        %1021 = vmatpush1.bf16.msra.mxu0 0
        %1022 = vmatprep.subr.bf16.mxu0 0
        %1023 = vmatpush1.bf16.msra.mxu0 0
        %1024 = vmatprep.subr.bf16.mxu0 0
        %1025 = vmatpush1.bf16.msra.mxu0 0
        %1026 = vmatprep.subr.bf16.mxu0 0
        %1027 = vmatpush1.bf16.msra.mxu0 0
        %1028 = vmatprep.subr.bf16.mxu0 0
        %1029 = vmatpush1.bf16.msra.mxu0 0
        %1030 = vmatprep.mubr.bf16.mxu0 0
        %1031 = vmatmul.mubr.bf16.gmra.mrb[0].mxu0 %v996
        %v1032 = vpop.f32.mrb[0].mxu0
        %v1033 = vadd.f32 %v983, %v1032
        %v1034 = vpop.f32.mrb[0].mxu0
        %v1035 = vpop.f32.mrb[0].mxu0
        %v1036 = vadd.f32 %v986, %v1035
        %v1037 = vpop.f32.mrb[0].mxu0
        %1038 = vdwg.mxu0
        %v1039 = vld [vmem:[%s8] sm:$0x1]
        %v1041 = vlaneseq
        %v1042 = vshrl.u32 %v1041, 7
        %v1043 = vsub.s32 0, %v1042
        %v1044 = vrot.slane %v1039, %v1043
        %v1046 = vadd.f32 %v1033, %v1044
        %v1047 = vadd.f32 %v1036, %v1044
        %v1048 = vmax.f32 %v1046, 0.0
        %v1049 = vmax.f32 %v1047, 0.0
        %v1050 = vpack.c.bf16 %v1049, %v1048
        %v1051 = vld [vmem:[%s9] sm:$0xf]
        %v1052 = vld [vmem:[%s9 + $0x4] sm:$0xf]
        %v1053 = vld [vmem:[%s9 + $0x8] sm:$0xf]
        %v1054 = vld [vmem:[%s9 + $0xc] sm:$0xf]
        %v1055 = vld [vmem:[%s10] sm:$0x1]
        %v1057 = vlaneseq
        %v1058 = vshrl.u32 %v1057, 7
        %v1059 = vsub.s32 0, %v1058
        %v1060 = vrot.slane %v1055, %v1059
        %v1066 = vunpack.c.l.b16 %v1051
        %v1067 = vunpack.c.l.b16 %v1052
        %v1068 = vunpack.c.l.b16 %v1053
        %v1069 = vunpack.c.l.b16 %v1054
        %v1070 = vpack.c.b16 %v1067, %v1066
        %v1071 = vpack.c.b16 %v1069, %v1068
        %vm1074 = vcmask 261120
        %v1076 = vsel %vm1074, %v1050, 0
        %1078 = vmatprep.subr.bf16.mxu0 0
        %1079 = vmatpush1.bf16.msra.mxu0 %v1070
        %1080 = vmatprep.subr.bf16.mxu0 0
        %1081 = vmatpush1.bf16.msra.mxu0 %v1071
        %1082 = vmatprep.subr.bf16.mxu0 0
        %1083 = vmatpush1.bf16.msra.mxu0 0
        %1084 = vmatprep.subr.bf16.mxu0 0
        %1085 = vmatpush1.bf16.msra.mxu0 0
        %1086 = vmatprep.subr.bf16.mxu0 0
        %1087 = vmatpush1.bf16.msra.mxu0 0
        %1088 = vmatprep.subr.bf16.mxu0 0
        %1089 = vmatpush1.bf16.msra.mxu0 0
        %1090 = vmatprep.subr.bf16.mxu0 0
        %1091 = vmatpush1.bf16.msra.mxu0 0
        %1092 = vmatprep.subr.bf16.mxu0 0
        %1093 = vmatpush1.bf16.msra.mxu0 0
        %1094 = vmatprep.subr.bf16.mxu0 0
        %1095 = vmatpush1.bf16.msra.mxu0 0
        %1096 = vmatprep.subr.bf16.mxu0 0
        %1097 = vmatpush1.bf16.msra.mxu0 0
        %1098 = vmatprep.subr.bf16.mxu0 0
        %1099 = vmatpush1.bf16.msra.mxu0 0
        %1100 = vmatprep.subr.bf16.mxu0 0
        %1101 = vmatpush1.bf16.msra.mxu0 0
        %1102 = vmatprep.subr.bf16.mxu0 0
        %1103 = vmatpush1.bf16.msra.mxu0 0
        %1104 = vmatprep.subr.bf16.mxu0 0
        %1105 = vmatpush1.bf16.msra.mxu0 0
        %1106 = vmatprep.subr.bf16.mxu0 0
        %1107 = vmatpush1.bf16.msra.mxu0 0
        %1108 = vmatprep.subr.bf16.mxu0 0
        %1109 = vmatpush1.bf16.msra.mxu0 0
        %1110 = vmatprep.mubr.bf16.mxu0 0
        %1111 = vmatmul.mubr.bf16.gmra.mrb[0].mxu0 %v1076
        %v1112 = vpop.f32.mrb[0].mxu0
        %v1113 = vadd.f32 %v1060, %v1112
        %v1114 = vpop.f32.mrb[0].mxu0
        %v1115 = vpop.f32.mrb[0].mxu0
        %v1116 = vadd.f32 %v1060, %v1115
        %v1117 = vpop.f32.mrb[0].mxu0
        %1118 = vdwg.mxu0
        %v1119 = vmax.f32 %v1113, 0.0
        %v1120 = vmax.f32 %v1116, 0.0
        %1121 = vst [vmem:[%s497] sm:$0xff] %v1119
        %1122 = vst [vmem:[%s497 + $0x8] sm:$0xff] %v1120
        %s1123 = sand.u32 %s314, 1
        %s1124 = scalar_lea.sflag [#allocation3], %s1123
        %s1125 = sand.u32 %s314, 1
        %s1126 = smul.addr %s1125, 16
        %s1127 = scalar_lea.vmem [#allocation2], %s1126
        // Predicated region
        $region65: #{tpu_custom_call.1} parent=63 // pred_check
          %p1128 = pneg %p324
        $region66: #{tpu_custom_call.1} parent=63 // pred_check_branch
          %1130 = sbr.rel (%p1128) target = $region68
        $region67: #{tpu_custom_call.1} parent=63 // pred_region
          %s1131 = smul.u32 2, %s30
          %s1133 = ssub.s32 256, 256
          %1134 = vsyncadd %s1124, %s1133
          %s1135 = smul.addr %s29, 2
          %s1136 = sadd.s32 %s1131, %s1135
          %s1137 = smul.addr %s1136, 128
          %s1138 = scalar_lea.hbm %s11, %s1137
          %s1139 = sshll.u32 %s1127, 4
          %s1140 = int_to_ptr.vmem [resolvable:$true] %s1139
          %1145 = dma.vmem_to_hbm [thread:$0]  %s1140, 256, %s1138, %s1124, 128, 128, 8
        $region68: #{tpu_custom_call.1} parent=63 // pred_fallthru
          _
      $region64: #{tpu_custom_call.1} parent=5 // pred_fallthru
        _
      %p1146 = scmp.le.s32.totalorder 2, %s20
      // Predicated region
      $region69: #{tpu_custom_call.1} parent=5 // pred_check
        %p1147 = pneg %p1146
      $region70: #{tpu_custom_call.1} parent=5 // pred_check_branch
        %1149 = sbr.rel (%p1147) target = $region72
      $region71: #{tpu_custom_call.1} parent=5 // pred_region
        %s1150 = ssub.s32 %s20, 2
        // Predicated region
        $region73: #{tpu_custom_call.1} parent=71 // pred_check
          %p1151 = pneg %p330
        $region74: #{tpu_custom_call.1} parent=71 // pred_check_branch
          %1153 = sbr.rel (%p1151) target = $region76
        $region75: #{tpu_custom_call.1} parent=71 // pred_region
          %s1154 = sand.u32 %s315, 1
          %s1155 = scalar_lea.sflag [#allocation3], %s1154
          %s1156 = sand.u32 %s315, 1
          %s1157 = smul.addr %s1156, 16
          %s1158 = scalar_lea.vmem [#allocation2], %s1157
          %1159 = dma.done %s1155, 256
        $region76: #{tpu_custom_call.1} parent=71 // pred_fallthru
          _
      $region72: #{tpu_custom_call.1} parent=5 // pred_fallthru
        _
    $region6: #{tpu_custom_call.1} parent=1 // loop_footer
      %s24 = sadd.s32 1, %s20
    $region7: #{tpu_custom_call.1} parent=1 // loop_footer_branch
      %19 = sbr.rel target = $region3
    $region8: #{tpu_custom_call.1} parent=1 // loop_exit
      _
    %1160 = vsyncpa [#allocation3], 1
    %s1161 = scalar_lea.sflag [#allocation3], 1
    %1162 = vsyncpa %s1161, 1

</llo_original>
